<compile_context>
chip_gen: v7x
topology: tpu7x:2x2x1
jax: 0.10.0
libtpu: 0.0.40
codegen_flags: <defaults>
</compile_context>

<pallas_src>
import functools

import jax
import jax.numpy as jnp
from jax.experimental import pallas as pl
from jax.experimental.pallas import tpu as pltpu


def _round_up(x, m):
    return (x + m - 1) // m * m


# ----------------------------------------------------------------------------
# Pallas kernel: direct (no-im2col) stride-1 VALID conv for one image.
# ----------------------------------------------------------------------------
def _conv_taps_kernel(x_ref, w_ref, o_ref, *, kh, kw, img_w, m_rows, use_bf16):
    """x_ref: (1, HWp, Cin_p)  flattened NHWC activation (+ zero pad rows), f32
       w_ref: (KH*KW, Cin_p, Cout_p)  per-tap weight matrices (bf16/f32)
       o_ref: (1, Ho*W, Cout_p) flattened NHWC output (invalid cols cut later)
    """
    cdt = jnp.bfloat16 if use_bf16 else jnp.float32
    cout_p = o_ref.shape[-1]
    acc = jnp.zeros((m_rows, cout_p), jnp.float32)
    for i in range(kh):
        for j in range(kw):
            s = i * img_w + j          # row shift of tap (i, j) in flat matrix
            a = x_ref[0, s:s + m_rows, :].astype(cdt)        # (m_rows, Cin_p)
            acc = acc + jnp.dot(a, w_ref[i * kw + j],
                                preferred_element_type=jnp.float32)
    o_ref[0] = acc


# ----------------------------------------------------------------------------
# Wrapper
# ----------------------------------------------------------------------------
@functools.partial(jax.jit, static_argnames=("use_bf16",))
def conv_preprocess_forward(x_nchw, weight, *, use_bf16=True):
    """y = Conv2d(Cin, Cout, K, bias=False, stride=1, pad=0)(x)  (NCHW in/out)."""
    n, cin, h, w = x_nchw.shape
    cout, cin_w, kh, kw = weight.shape
    assert cin_w == cin
    ho, wo = h - kh + 1, w - kw + 1
    m_rows = ho * w                       # compute full-W rows; slice Wo later

    cin_p = _round_up(cin, 8)             # contraction-dim padding (cheap, zeros)
    cout_p = _round_up(cout, 128)         # lane-dense, unmasked output stores
    max_shift = (kh - 1) * w + (kw - 1)
    hwp = _round_up(h * w + max_shift, 8)

    # NCHW -> NHWC -> flat (N, H*W, Cin): just a transpose + free reshape,
    # no tap duplication / im2col in HBM.
    x = jnp.transpose(x_nchw, (0, 2, 3, 1)).astype(jnp.float32)
    x = x.reshape(n, h * w, cin)
    x = jnp.pad(x, ((0, 0), (0, hwp - h * w), (0, cin_p - cin)))

    # weight (Cout, Cin, KH, KW) -> (KH*KW, Cin_p, Cout_p), bf16 for the MXU.
    wt = jnp.transpose(weight, (2, 3, 1, 0)).reshape(kh * kw, cin, cout)
    wt = jnp.pad(wt, ((0, 0), (0, cin_p - cin), (0, cout_p - cout)))
    wt = wt.astype(jnp.bfloat16 if use_bf16 else jnp.float32)

    kernel = functools.partial(_conv_taps_kernel, kh=kh, kw=kw, img_w=w,
                               m_rows=m_rows, use_bf16=use_bf16)
    out = pl.pallas_call(
        kernel,
        out_shape=jax.ShapeDtypeStruct((n, m_rows, cout_p), jnp.float32),
        grid_spec=pltpu.PrefetchScalarGridSpec(
            num_scalar_prefetch=0,
            grid=(n,),                                    # >= 2 parallel steps
            in_specs=[
                pl.BlockSpec((1, hwp, cin_p), lambda b: (b, 0, 0)),
                pl.BlockSpec((kh * kw, cin_p, cout_p), lambda b: (0, 0, 0)),
            ],
            out_specs=pl.BlockSpec((1, m_rows, cout_p), lambda b: (b, 0, 0)),
        ),
        compiler_params=pltpu.CompilerParams(
            dimension_semantics=("parallel",)),
    )(x, wt)

    # (N, Ho*W, Cout_p) -> (N, Ho, W, Cout_p) -> keep valid cols/chans -> NCHW.
    out = out.reshape(n, ho, w, cout_p)[:, :, :wo, :cout]
    return jnp.transpose(out, (0, 3, 1, 2))


# ----------------------------------------------------------------------------
# Pure-JAX reference (correctness check)
# ----------------------------------------------------------------------------
def _ref_forward(x_nchw, weight):
    return jax.lax.conv_general_dilated(
        x_nchw.astype(jnp.float32), weight.astype(jnp.float32),
        window_strides=(1, 1), padding="VALID",
        dimension_numbers=("NCHW", "OIHW", "NCHW"),
        precision=jax.lax.Precision.HIGHEST)


if __name__ == "__main__":
    key = jax.random.PRNGKey(0)
    k_x, k_w = jax.random.split(key)

    # ConvPreprocess(in_channels=4, kernel_size=3, start_out_channels=32)
    N, Cin, H, W = 2, 4, 16, 16
    KH = KW = 3
    Cout = 32

    x = jax.random.normal(k_x, (N, Cin, H, W), jnp.float32)        # NCHW input
    w = jax.random.normal(k_w, (Cout, Cin, KH, KW), jnp.float32) / jnp.sqrt(
        Cin * KH * KW)

    out = jax.block_until_ready(conv_preprocess_forward(x, w))
    assert out.shape == (N, Cout, H - KH + 1, W - KW + 1), out.shape

    ref = jax.block_until_ready(_ref_forward(x, w))
    max_err = float(jnp.max(jnp.abs(out - ref)))
    # Tolerance accommodates bf16 MXU operands (f32 accumulation).
    assert jnp.allclose(out, ref, rtol=5e-2, atol=5e-2), max_err

    print("KERNEL_OK")
</pallas_src>

<mosaic_0001>
module attributes {stable_mosaic.version = 11 : i64} {
  func.func @_conv_taps_kernel(%arg0: i32, %arg1: memref<1x296x8xf32, #tpu.memory_space<vmem>>, %arg2: memref<9x8x128xbf16, #tpu.memory_space<vmem>>, %arg3: memref<1x224x128xf32, #tpu.memory_space<vmem>>) attributes {dimension_semantics = [#tpu.dimension_semantics<parallel>], iteration_bounds = array<i64: 2>, scalar_prefetch = 0 : i64, scratch_operands = 0 : i64, tpu.core_type = #tpu.core_type<tc>, window_params = [{transform_indices = @transform_0, window_bounds = array<i64: 1, 296, 8>}, {pipeline_mode = #tpu.pipeline_mode<synchronous>, transform_indices = @transform_1, window_bounds = array<i64: 9, 8, 128>}, {transform_indices = @transform_2, window_bounds = array<i64: 1, 224, 128>}]} {
    %cst = arith.constant 0.000000e+00 : f32
    %0 = vector.broadcast %cst : f32 to vector<224x128xf32>
    %c0 = arith.constant 0 : index
    %c0_0 = arith.constant 0 : index
    %c0_1 = arith.constant 0 : index
    %1 = vector.load %arg1[%c0, %c0_0, %c0_1] : memref<1x296x8xf32, #tpu.memory_space<vmem>>, vector<1x224x8xf32>
    %2 = vector.shape_cast %1 : vector<1x224x8xf32> to vector<224x8xf32>
    %3 = arith.truncf %2 : vector<224x8xf32> to vector<224x8xbf16>
    %c0_2 = arith.constant 0 : index
    %c0_3 = arith.constant 0 : index
    %c0_4 = arith.constant 0 : index
    %4 = vector.load %arg2[%c0_2, %c0_3, %c0_4] : memref<9x8x128xbf16, #tpu.memory_space<vmem>>, vector<1x8x128xbf16>
    %5 = vector.shape_cast %4 : vector<1x8x128xbf16> to vector<8x128xbf16>
    %cst_5 = arith.constant dense<0.000000e+00> : vector<224x128xf32>
    %6 = tpu.matmul %3, %5, %cst_5 {dimension_numbers = #tpu.dot_dimension_numbers<[1], [0], [0], [1], [0, 0, 1, 1], [], []>} : vector<224x8xbf16>, vector<8x128xbf16>, vector<224x128xf32> -> vector<224x128xf32>
    %7 = arith.addf %0, %6 : vector<224x128xf32>
    %c0_6 = arith.constant 0 : index
    %c1 = arith.constant 1 : index
    %c0_7 = arith.constant 0 : index
    %8 = vector.load %arg1[%c0_6, %c1, %c0_7] : memref<1x296x8xf32, #tpu.memory_space<vmem>>, vector<1x224x8xf32>
    %9 = vector.shape_cast %8 : vector<1x224x8xf32> to vector<224x8xf32>
    %10 = arith.truncf %9 : vector<224x8xf32> to vector<224x8xbf16>
    %c1_8 = arith.constant 1 : index
    %c0_9 = arith.constant 0 : index
    %c0_10 = arith.constant 0 : index
    %11 = vector.load %arg2[%c1_8, %c0_9, %c0_10] : memref<9x8x128xbf16, #tpu.memory_space<vmem>>, vector<1x8x128xbf16>
    %12 = vector.shape_cast %11 : vector<1x8x128xbf16> to vector<8x128xbf16>
    %cst_11 = arith.constant dense<0.000000e+00> : vector<224x128xf32>
    %13 = tpu.matmul %10, %12, %cst_11 {dimension_numbers = #tpu.dot_dimension_numbers<[1], [0], [0], [1], [0, 0, 1, 1], [], []>} : vector<224x8xbf16>, vector<8x128xbf16>, vector<224x128xf32> -> vector<224x128xf32>
    %14 = arith.addf %7, %13 : vector<224x128xf32>
    %c0_12 = arith.constant 0 : index
    %c2 = arith.constant 2 : index
    %c0_13 = arith.constant 0 : index
    %15 = vector.load %arg1[%c0_12, %c2, %c0_13] : memref<1x296x8xf32, #tpu.memory_space<vmem>>, vector<1x224x8xf32>
    %16 = vector.shape_cast %15 : vector<1x224x8xf32> to vector<224x8xf32>
    %17 = arith.truncf %16 : vector<224x8xf32> to vector<224x8xbf16>
    %c2_14 = arith.constant 2 : index
    %c0_15 = arith.constant 0 : index
    %c0_16 = arith.constant 0 : index
    %18 = vector.load %arg2[%c2_14, %c0_15, %c0_16] : memref<9x8x128xbf16, #tpu.memory_space<vmem>>, vector<1x8x128xbf16>
    %19 = vector.shape_cast %18 : vector<1x8x128xbf16> to vector<8x128xbf16>
    %cst_17 = arith.constant dense<0.000000e+00> : vector<224x128xf32>
    %20 = tpu.matmul %17, %19, %cst_17 {dimension_numbers = #tpu.dot_dimension_numbers<[1], [0], [0], [1], [0, 0, 1, 1], [], []>} : vector<224x8xbf16>, vector<8x128xbf16>, vector<224x128xf32> -> vector<224x128xf32>
    %21 = arith.addf %14, %20 : vector<224x128xf32>
    %c0_18 = arith.constant 0 : index
    %c16 = arith.constant 16 : index
    %c0_19 = arith.constant 0 : index
    %22 = vector.load %arg1[%c0_18, %c16, %c0_19] : memref<1x296x8xf32, #tpu.memory_space<vmem>>, vector<1x224x8xf32>
    %23 = vector.shape_cast %22 : vector<1x224x8xf32> to vector<224x8xf32>
    %24 = arith.truncf %23 : vector<224x8xf32> to vector<224x8xbf16>
    %c3 = arith.constant 3 : index
    %c0_20 = arith.constant 0 : index
    %c0_21 = arith.constant 0 : index
    %25 = vector.load %arg2[%c3, %c0_20, %c0_21] : memref<9x8x128xbf16, #tpu.memory_space<vmem>>, vector<1x8x128xbf16>
    %26 = vector.shape_cast %25 : vector<1x8x128xbf16> to vector<8x128xbf16>
    %cst_22 = arith.constant dense<0.000000e+00> : vector<224x128xf32>
    %27 = tpu.matmul %24, %26, %cst_22 {dimension_numbers = #tpu.dot_dimension_numbers<[1], [0], [0], [1], [0, 0, 1, 1], [], []>} : vector<224x8xbf16>, vector<8x128xbf16>, vector<224x128xf32> -> vector<224x128xf32>
    %28 = arith.addf %21, %27 : vector<224x128xf32>
    %c0_23 = arith.constant 0 : index
    %c17 = arith.constant 17 : index
    %c0_24 = arith.constant 0 : index
    %29 = vector.load %arg1[%c0_23, %c17, %c0_24] : memref<1x296x8xf32, #tpu.memory_space<vmem>>, vector<1x224x8xf32>
    %30 = vector.shape_cast %29 : vector<1x224x8xf32> to vector<224x8xf32>
    %31 = arith.truncf %30 : vector<224x8xf32> to vector<224x8xbf16>
    %c4 = arith.constant 4 : index
    %c0_25 = arith.constant 0 : index
    %c0_26 = arith.constant 0 : index
    %32 = vector.load %arg2[%c4, %c0_25, %c0_26] : memref<9x8x128xbf16, #tpu.memory_space<vmem>>, vector<1x8x128xbf16>
    %33 = vector.shape_cast %32 : vector<1x8x128xbf16> to vector<8x128xbf16>
    %cst_27 = arith.constant dense<0.000000e+00> : vector<224x128xf32>
    %34 = tpu.matmul %31, %33, %cst_27 {dimension_numbers = #tpu.dot_dimension_numbers<[1], [0], [0], [1], [0, 0, 1, 1], [], []>} : vector<224x8xbf16>, vector<8x128xbf16>, vector<224x128xf32> -> vector<224x128xf32>
    %35 = arith.addf %28, %34 : vector<224x128xf32>
    %c0_28 = arith.constant 0 : index
    %c18 = arith.constant 18 : index
    %c0_29 = arith.constant 0 : index
    %36 = vector.load %arg1[%c0_28, %c18, %c0_29] : memref<1x296x8xf32, #tpu.memory_space<vmem>>, vector<1x224x8xf32>
    %37 = vector.shape_cast %36 : vector<1x224x8xf32> to vector<224x8xf32>
    %38 = arith.truncf %37 : vector<224x8xf32> to vector<224x8xbf16>
    %c5 = arith.constant 5 : index
    %c0_30 = arith.constant 0 : index
    %c0_31 = arith.constant 0 : index
    %39 = vector.load %arg2[%c5, %c0_30, %c0_31] : memref<9x8x128xbf16, #tpu.memory_space<vmem>>, vector<1x8x128xbf16>
    %40 = vector.shape_cast %39 : vector<1x8x128xbf16> to vector<8x128xbf16>
    %cst_32 = arith.constant dense<0.000000e+00> : vector<224x128xf32>
    %41 = tpu.matmul %38, %40, %cst_32 {dimension_numbers = #tpu.dot_dimension_numbers<[1], [0], [0], [1], [0, 0, 1, 1], [], []>} : vector<224x8xbf16>, vector<8x128xbf16>, vector<224x128xf32> -> vector<224x128xf32>
    %42 = arith.addf %35, %41 : vector<224x128xf32>
    %c0_33 = arith.constant 0 : index
    %c32 = arith.constant 32 : index
    %c0_34 = arith.constant 0 : index
    %43 = vector.load %arg1[%c0_33, %c32, %c0_34] : memref<1x296x8xf32, #tpu.memory_space<vmem>>, vector<1x224x8xf32>
    %44 = vector.shape_cast %43 : vector<1x224x8xf32> to vector<224x8xf32>
    %45 = arith.truncf %44 : vector<224x8xf32> to vector<224x8xbf16>
    %c6 = arith.constant 6 : index
    %c0_35 = arith.constant 0 : index
    %c0_36 = arith.constant 0 : index
    %46 = vector.load %arg2[%c6, %c0_35, %c0_36] : memref<9x8x128xbf16, #tpu.memory_space<vmem>>, vector<1x8x128xbf16>
    %47 = vector.shape_cast %46 : vector<1x8x128xbf16> to vector<8x128xbf16>
    %cst_37 = arith.constant dense<0.000000e+00> : vector<224x128xf32>
    %48 = tpu.matmul %45, %47, %cst_37 {dimension_numbers = #tpu.dot_dimension_numbers<[1], [0], [0], [1], [0, 0, 1, 1], [], []>} : vector<224x8xbf16>, vector<8x128xbf16>, vector<224x128xf32> -> vector<224x128xf32>
    %49 = arith.addf %42, %48 : vector<224x128xf32>
    %c0_38 = arith.constant 0 : index
    %c33 = arith.constant 33 : index
    %c0_39 = arith.constant 0 : index
    %50 = vector.load %arg1[%c0_38, %c33, %c0_39] : memref<1x296x8xf32, #tpu.memory_space<vmem>>, vector<1x224x8xf32>
    %51 = vector.shape_cast %50 : vector<1x224x8xf32> to vector<224x8xf32>
    %52 = arith.truncf %51 : vector<224x8xf32> to vector<224x8xbf16>
    %c7 = arith.constant 7 : index
    %c0_40 = arith.constant 0 : index
    %c0_41 = arith.constant 0 : index
    %53 = vector.load %arg2[%c7, %c0_40, %c0_41] : memref<9x8x128xbf16, #tpu.memory_space<vmem>>, vector<1x8x128xbf16>
    %54 = vector.shape_cast %53 : vector<1x8x128xbf16> to vector<8x128xbf16>
    %cst_42 = arith.constant dense<0.000000e+00> : vector<224x128xf32>
    %55 = tpu.matmul %52, %54, %cst_42 {dimension_numbers = #tpu.dot_dimension_numbers<[1], [0], [0], [1], [0, 0, 1, 1], [], []>} : vector<224x8xbf16>, vector<8x128xbf16>, vector<224x128xf32> -> vector<224x128xf32>
    %56 = arith.addf %49, %55 : vector<224x128xf32>
    %c0_43 = arith.constant 0 : index
    %c34 = arith.constant 34 : index
    %c0_44 = arith.constant 0 : index
    %57 = vector.load %arg1[%c0_43, %c34, %c0_44] : memref<1x296x8xf32, #tpu.memory_space<vmem>>, vector<1x224x8xf32>
    %58 = vector.shape_cast %57 : vector<1x224x8xf32> to vector<224x8xf32>
    %59 = arith.truncf %58 : vector<224x8xf32> to vector<224x8xbf16>
    %c8 = arith.constant 8 : index
    %c0_45 = arith.constant 0 : index
    %c0_46 = arith.constant 0 : index
    %60 = vector.load %arg2[%c8, %c0_45, %c0_46] : memref<9x8x128xbf16, #tpu.memory_space<vmem>>, vector<1x8x128xbf16>
    %61 = vector.shape_cast %60 : vector<1x8x128xbf16> to vector<8x128xbf16>
    %cst_47 = arith.constant dense<0.000000e+00> : vector<224x128xf32>
    %62 = tpu.matmul %59, %61, %cst_47 {dimension_numbers = #tpu.dot_dimension_numbers<[1], [0], [0], [1], [0, 0, 1, 1], [], []>} : vector<224x8xbf16>, vector<8x128xbf16>, vector<224x128xf32> -> vector<224x128xf32>
    %63 = arith.addf %56, %62 : vector<224x128xf32>
    %c0_48 = arith.constant 0 : index
    %c0_49 = arith.constant 0 : index
    %c0_50 = arith.constant 0 : index
    %64 = vector.load %arg3[%c0_48, %c0_49, %c0_50] : memref<1x224x128xf32, #tpu.memory_space<vmem>>, vector<1x224x128xf32>
    %65 = vector.shape_cast %64 : vector<1x224x128xf32> to vector<224x128xf32>
    %66 = vector.shape_cast %63 : vector<224x128xf32> to vector<1x224x128xf32>
    tpu.vector_store %arg3[%c0_48, %c0_49, %c0_50], %66 {strides = array<i32>} : memref<1x224x128xf32, #tpu.memory_space<vmem>>, vector<1x224x128xf32>,
    return
  }
  func.func @transform_0(%arg0: i32) -> (i32, i32, i32) {
    %c0_i32 = arith.constant 0 : i32
    %c0_i32_0 = arith.constant 0 : i32
    %c0_i32_1 = arith.constant 0 : i32
    return %arg0, %c0_i32, %c0_i32_0 : i32, i32, i32
  }
  func.func @transform_1(%arg0: i32) -> (i32, i32, i32) {
    %c0_i32 = arith.constant 0 : i32
    %c0_i32_0 = arith.constant 0 : i32
    %c0_i32_1 = arith.constant 0 : i32
    %c0_i32_2 = arith.constant 0 : i32
    return %c0_i32, %c0_i32_0, %c0_i32_1 : i32, i32, i32
  }
  func.func @transform_2(%arg0: i32) -> (i32, i32, i32) {
    %c0_i32 = arith.constant 0 : i32
    %c0_i32_0 = arith.constant 0 : i32
    %c0_i32_1 = arith.constant 0 : i32
    return %arg0, %c0_i32, %c0_i32_0 : i32, i32, i32
  }
}

</mosaic_0001>

<llo_original>
// kernel: conv_preprocess_forward.1
$region0: #{conv_preprocess_forward.1}
  #allocation0 [shape = 'u32[]', space=smem, size = 0x4, offset = 0x4, fixed_abs, tag = 'smem constant byte address 0x4 - core index']
  #allocation1 [shape = 'u32[144,128]{1,0:T(1,128)}', space=vmem, size = 0x12000, scoped, tag = 'internal scratch']
  %s0 = inlined_call_operand.vmem [shape: f32[2,296,8], index: 0, kind: input, shape index: {}]
  %s1 = inlined_call_operand.vmem [shape: bf16[9,8,128], index: 1, kind: input, shape index: {}]
  %s2 = inlined_call_operand.vmem [shape: f32[2,224,128], index: 2, kind: output, shape index: {}]
  %s3 = sld [smem:[#allocation0]]
  $region41: #{conv_preprocess_forward.1} parent=0
    _
  %s5 = ssub.s32 1, %s3
  %s6 = scalar_select 0, %s5, %s3
  loop: start=0, step=1, limit=4
  $region2: #{conv_preprocess_forward.1} parent=0 // loop_pre_header
    _
  $region3: #{conv_preprocess_forward.1} parent=0 // loop_header
    %s8 = sphi 0, %s12
    %p9 = scmp.ge.s32.totalorder %s8, 4
    %s18 = sphi 0, %s20
    %s21 = sphi 0, %s18
    %s22 = sphi 0, %s21
    %s38 = sphi 0, %s22
    %s42 = sphi 0, %s42
    %s44 = sphi 0, %s42
    %s45 = sphi 0, %s44
    %s59 = sphi 0, %s45
    %s65 = sphi 0, %s67
    %s68 = sphi 0, %s65
    %s69 = sphi 0, %s68
    %s85 = sphi 0, %s69
  $region4: #{conv_preprocess_forward.1} parent=0 // loop_header_branch
    %11 = sbr.rel (%p9) target = $region8
  $region5: #{conv_preprocess_forward.1} parent=0 // loop_body
    %s13 = ssub.s32 %s8, 1
    %s14 = ssub.s32 %s8, 2
    %s15 = sadd.s32 %s8, 1
    %s16 = ssub.s32 %s8, %s15
    %p17 = scmp.eq.s32.totalorder %s16, 0
    %s19 = sadd.s32 %s18, 1
    %s20 = scalar_select %p17, %s18, %s19
    %p23 = pneg %p17
    %p24 = scmp.eq.s32.totalorder %s8, 1
    %p25 = por %p23, %p24
    %p26 = scmp.ne.s32.totalorder %s18, %s21
    %p27 = scmp.eq.s32.totalorder %s8, 0
    %p28 = por %p26, %p27
    %p29 = scmp.ne.s32.totalorder %s18, %s21
    %p30 = scmp.eq.s32.totalorder %s13, 1
    %p31 = por %p29, %p30
    %p32 = scmp.ne.s32.totalorder %s21, %s22
    %p33 = scmp.eq.s32.totalorder %s13, 0
    %p34 = por %p32, %p33
    %p35 = scmp.ne.s32.totalorder %s21, %s22
    %p36 = scmp.eq.s32.totalorder %s14, 1
    %p37 = por %p35, %p36
    %p39 = scmp.ne.s32.totalorder %s22, %s38
    %p40 = scmp.eq.s32.totalorder %s14, 0
    %p41 = por %p39, %p40
    %s43 = sadd.s32 %s42, 1
    %p46 = scmp.eq.s32.totalorder %s8, 1
    %p47 = scmp.ne.s32.totalorder %s42, %s44
    %p48 = scmp.eq.s32.totalorder %s8, 0
    %p49 = por %p47, %p48
    %p50 = scmp.ne.s32.totalorder %s42, %s44
    %p51 = scmp.eq.s32.totalorder %s13, 1
    %p52 = por %p50, %p51
    %p53 = scmp.ne.s32.totalorder %s44, %s45
    %p54 = scmp.eq.s32.totalorder %s13, 0
    %p55 = por %p53, %p54
    %p56 = scmp.ne.s32.totalorder %s44, %s45
    %p57 = scmp.eq.s32.totalorder %s14, 1
    %p58 = por %p56, %p57
    %p60 = scmp.ne.s32.totalorder %s45, %s59
    %p61 = scmp.eq.s32.totalorder %s14, 0
    %p62 = por %p60, %p61
    %s63 = ssub.s32 %s8, %s15
    %p64 = scmp.eq.s32.totalorder %s63, 0
    %s66 = sadd.s32 %s65, 1
    %s67 = scalar_select %p64, %s65, %s66
    %p70 = pneg %p64
    %p71 = scmp.eq.s32.totalorder %s8, 1
    %p72 = por %p70, %p71
    %p73 = scmp.ne.s32.totalorder %s65, %s68
    %p74 = scmp.eq.s32.totalorder %s8, 0
    %p75 = por %p73, %p74
    %p76 = scmp.ne.s32.totalorder %s65, %s68
    %p77 = scmp.eq.s32.totalorder %s13, 1
    %p78 = por %p76, %p77
    %p79 = scmp.ne.s32.totalorder %s68, %s69
    %p80 = scmp.eq.s32.totalorder %s13, 0
    %p81 = por %p79, %p80
    %p82 = scmp.ne.s32.totalorder %s68, %s69
    %p83 = scmp.eq.s32.totalorder %s14, 1
    %p84 = por %p82, %p83
    %p86 = scmp.ne.s32.totalorder %s69, %s85
    %p87 = scmp.eq.s32.totalorder %s14, 0
    %p88 = por %p86, %p87
    %p89 = scmp.le.s32.totalorder 1, %s8
    %p90 = scmp.lt.s32.totalorder %s8, 3
    %p91 = pnand %p89, %p90
    %p92 = pneg %p91
    // Predicated region
    $region9: #{conv_preprocess_forward.1} parent=5 // pred_check
      _
    $region10: #{conv_preprocess_forward.1} parent=5 // pred_check_branch
      %94 = sbr.rel (%p91) target = $region12
    $region11: #{conv_preprocess_forward.1} parent=5 // pred_region
      %s95 = ssub.s32 %s8, 1
      // Predicated region
      $region13: #{conv_preprocess_forward.1} parent=11 // pred_check
        %p96 = pneg %p55
      $region14: #{conv_preprocess_forward.1} parent=11 // pred_check_branch
        %98 = sbr.rel (%p96) target = $region16
      $region15: #{conv_preprocess_forward.1} parent=11 // pred_region
        _
      $region16: #{conv_preprocess_forward.1} parent=11 // pred_fallthru
        _
    $region12: #{conv_preprocess_forward.1} parent=5 // pred_fallthru
      _
    %p99 = scmp.lt.s32.totalorder %s8, 2
    // Predicated region
    $region17: #{conv_preprocess_forward.1} parent=5 // pred_check
      %p100 = pneg %p99
    $region18: #{conv_preprocess_forward.1} parent=5 // pred_check_branch
      %102 = sbr.rel (%p100) target = $region20
    $region19: #{conv_preprocess_forward.1} parent=5 // pred_region
      // Predicated region
      $region21: #{conv_preprocess_forward.1} parent=19 // pred_check
        %p103 = pneg %p28
      $region22: #{conv_preprocess_forward.1} parent=19 // pred_check_branch
        %105 = sbr.rel (%p103) target = $region24
      $region23: #{conv_preprocess_forward.1} parent=19 // pred_region
        %p106 = scmp.lt.s32.totalorder %s8, 1
        %s107 = scalar_select %p106, %s8, 1
        %s108 = smul.addr %s107, 37
        %s109 = smul.addr %s108, 8
        %s110 = scalar_lea.vmem %s0, %s109
      $region24: #{conv_preprocess_forward.1} parent=19 // pred_fallthru
        _
    $region20: #{conv_preprocess_forward.1} parent=5 // pred_fallthru
      _
    %p111 = scmp.le.s32.totalorder 1, %s8
    %p112 = scmp.lt.s32.totalorder %s8, 3
    %p113 = pnand %p111, %p112
    %p114 = pneg %p113
    // Predicated region
    $region25: #{conv_preprocess_forward.1} parent=5 // pred_check
      _
    $region26: #{conv_preprocess_forward.1} parent=5 // pred_check_branch
      %116 = sbr.rel (%p113) target = $region28
    $region27: #{conv_preprocess_forward.1} parent=5 // pred_region
      %s117 = ssub.s32 %s8, 1
      %p118 = scmp.lt.s32.totalorder %s13, 1
      %s119 = scalar_select %p118, %s13, 1
      %s120 = smul.addr %s119, 37
      %s121 = smul.addr %s120, 8
      %s122 = scalar_lea.vmem %s0, %s121
      %p123 = pneg %p34
      %p124 = pneg %p31
      %p125 = pneg %p55
      %p126 = pneg %p52
      %p127 = pneg %p81
      %p128 = pneg %p78
      %p129 = scmp.lt.s32.totalorder %s13, 1
      %s130 = scalar_select %p129, %s13, 1
      %s131 = smul.addr %s130, 28
      %s132 = smul.addr %s131, 8
      %s133 = scalar_lea.vmem %s2, %s132
      %p134 = scmp.lt.s32.totalorder %s13, 1
      %s135 = scalar_select %p134, %s13, 1
      %s136 = smul.addr %s135, 37
      %s137 = smul.addr %s136, 8
      %s138 = scalar_lea.vmem %s0, %s137
      %p139 = scmp.lt.s32.totalorder %s13, 1
      %s140 = scalar_select %p139, %s13, 1
      %s141 = smul.addr %s140, 28
      %s142 = smul.addr %s141, 8
      %s143 = scalar_lea.vmem %s2, %s142
      %v145 = vld [vmem:[%s138] sm:$0xff]
      %v146 = vld [vmem:[%s138 + $0x8] sm:$0xff]
      %v147 = vld [vmem:[%s138 + $0x10] sm:$0xff]
      %v148 = vld [vmem:[%s138 + $0x18] sm:$0xff]
      %v149 = vld [vmem:[%s138 + $0x20] sm:$0xff]
      %v150 = vld [vmem:[%s138 + $0x28] sm:$0xff]
      %v151 = vld [vmem:[%s138 + $0x30] sm:$0xff]
      %v152 = vld [vmem:[%s138 + $0x38] sm:$0xff]
      %v153 = vld [vmem:[%s138 + $0x40] sm:$0xff]
      %v154 = vld [vmem:[%s138 + $0x48] sm:$0xff]
      %v155 = vld [vmem:[%s138 + $0x50] sm:$0xff]
      %v156 = vld [vmem:[%s138 + $0x58] sm:$0xff]
      %v157 = vld [vmem:[%s138 + $0x60] sm:$0xff]
      %v158 = vld [vmem:[%s138 + $0x68] sm:$0xff]
      %v159 = vld [vmem:[%s138 + $0x70] sm:$0xff]
      %v160 = vld [vmem:[%s138 + $0x78] sm:$0xff]
      %v161 = vld [vmem:[%s138 + $0x80] sm:$0xff]
      %v162 = vld [vmem:[%s138 + $0x88] sm:$0xff]
      %v163 = vld [vmem:[%s138 + $0x90] sm:$0xff]
      %v164 = vld [vmem:[%s138 + $0x98] sm:$0xff]
      %v165 = vld [vmem:[%s138 + $0xa0] sm:$0xff]
      %v166 = vld [vmem:[%s138 + $0xa8] sm:$0xff]
      %v167 = vld [vmem:[%s138 + $0xb0] sm:$0xff]
      %v168 = vld [vmem:[%s138 + $0xb8] sm:$0xff]
      %v169 = vld [vmem:[%s138 + $0xc0] sm:$0xff]
      %v170 = vld [vmem:[%s138 + $0xc8] sm:$0xff]
      %v171 = vld [vmem:[%s138 + $0xd0] sm:$0xff]
      %v172 = vld [vmem:[%s138 + $0xd8] sm:$0xff]
      %v173 = vpack.c.bf16 %v146, %v145
      %v174 = vpack.c.bf16 %v148, %v147
      %v175 = vpack.c.bf16 %v150, %v149
      %v176 = vpack.c.bf16 %v152, %v151
      %v177 = vpack.c.bf16 %v154, %v153
      %v178 = vpack.c.bf16 %v156, %v155
      %v179 = vpack.c.bf16 %v158, %v157
      %v180 = vpack.c.bf16 %v160, %v159
      %v181 = vpack.c.bf16 %v162, %v161
      %v182 = vpack.c.bf16 %v164, %v163
      %v183 = vpack.c.bf16 %v166, %v165
      %v184 = vpack.c.bf16 %v168, %v167
      %v185 = vpack.c.bf16 %v170, %v169
      %v186 = vpack.c.bf16 %v172, %v171
      %v187 = vld [vmem:[%s1] sm:$0xf]
      %v188 = vld [vmem:[%s138 + $0x1] sm:$0xff]
      %v189 = vld [vmem:[%s138 + $0x9] sm:$0xff]
      %v190 = vld [vmem:[%s138 + $0x11] sm:$0xff]
      %v191 = vld [vmem:[%s138 + $0x19] sm:$0xff]
      %v192 = vld [vmem:[%s138 + $0x21] sm:$0xff]
      %v193 = vld [vmem:[%s138 + $0x29] sm:$0xff]
      %v194 = vld [vmem:[%s138 + $0x31] sm:$0xff]
      %v195 = vld [vmem:[%s138 + $0x39] sm:$0xff]
      %v196 = vld [vmem:[%s138 + $0x41] sm:$0xff]
      %v197 = vld [vmem:[%s138 + $0x49] sm:$0xff]
      %v198 = vld [vmem:[%s138 + $0x51] sm:$0xff]
      %v199 = vld [vmem:[%s138 + $0x59] sm:$0xff]
      %v200 = vld [vmem:[%s138 + $0x61] sm:$0xff]
      %v201 = vld [vmem:[%s138 + $0x69] sm:$0xff]
      %v202 = vld [vmem:[%s138 + $0x71] sm:$0xff]
      %v203 = vld [vmem:[%s138 + $0x79] sm:$0xff]
      %v204 = vld [vmem:[%s138 + $0x81] sm:$0xff]
      %v205 = vld [vmem:[%s138 + $0x89] sm:$0xff]
      %v206 = vld [vmem:[%s138 + $0x91] sm:$0xff]
      %v207 = vld [vmem:[%s138 + $0x99] sm:$0xff]
      %v208 = vld [vmem:[%s138 + $0xa1] sm:$0xff]
      %v209 = vld [vmem:[%s138 + $0xa9] sm:$0xff]
      %v210 = vld [vmem:[%s138 + $0xb1] sm:$0xff]
      %v211 = vld [vmem:[%s138 + $0xb9] sm:$0xff]
      %v212 = vld [vmem:[%s138 + $0xc1] sm:$0xff]
      %v213 = vld [vmem:[%s138 + $0xc9] sm:$0xff]
      %v214 = vld [vmem:[%s138 + $0xd1] sm:$0xff]
      %v215 = vld [vmem:[%s138 + $0xd9] sm:$0xff]
      %v216 = vpack.c.bf16 %v189, %v188
      %v217 = vpack.c.bf16 %v191, %v190
      %v218 = vpack.c.bf16 %v193, %v192
      %v219 = vpack.c.bf16 %v195, %v194
      %v220 = vpack.c.bf16 %v197, %v196
      %v221 = vpack.c.bf16 %v199, %v198
      %v222 = vpack.c.bf16 %v201, %v200
      %v223 = vpack.c.bf16 %v203, %v202
      %v224 = vpack.c.bf16 %v205, %v204
      %v225 = vpack.c.bf16 %v207, %v206
      %v226 = vpack.c.bf16 %v209, %v208
      %v227 = vpack.c.bf16 %v211, %v210
      %v228 = vpack.c.bf16 %v213, %v212
      %v229 = vpack.c.bf16 %v215, %v214
      %s230 = scalar_lea.vmem %s1, 4
      %v231 = vld [vmem:[%s230] sm:$0xf]
      %vm232 = vcmask 64512
      %v234 = vsel %vm232, %v216, 0
      %v237 = vsel %vm232, %v217, 0
      %v240 = vsel %vm232, %v218, 0
      %v243 = vsel %vm232, %v219, 0
      %v246 = vsel %vm232, %v220, 0
      %v249 = vsel %vm232, %v221, 0
      %v252 = vsel %vm232, %v222, 0
      %v255 = vsel %vm232, %v223, 0
      %v258 = vsel %vm232, %v224, 0
      %v261 = vsel %vm232, %v225, 0
      %v264 = vsel %vm232, %v226, 0
      %v267 = vsel %vm232, %v227, 0
      %v270 = vsel %vm232, %v228, 0
      %v273 = vsel %vm232, %v229, 0
      %vm275 = vcmask 1043456
      %v277 = vsel %vm275, %v231, 0
      %279 = vmatprep.subr.bf16.mxu0 0
      %280 = vmatpush1.bf16.msra.mxu0 %v277
      %281 = vmatprep.subr.bf16.mxu0 0
      %282 = vmatpush1.bf16.msra.mxu0 0
      %283 = vmatprep.subr.bf16.mxu0 0
      %284 = vmatpush1.bf16.msra.mxu0 0
      %285 = vmatprep.subr.bf16.mxu0 0
      %286 = vmatpush1.bf16.msra.mxu0 0
      %287 = vmatprep.subr.bf16.mxu0 0
      %288 = vmatpush1.bf16.msra.mxu0 0
      %289 = vmatprep.subr.bf16.mxu0 0
      %290 = vmatpush1.bf16.msra.mxu0 0
      %291 = vmatprep.subr.bf16.mxu0 0
      %292 = vmatpush1.bf16.msra.mxu0 0
      %293 = vmatprep.subr.bf16.mxu0 0
      %294 = vmatpush1.bf16.msra.mxu0 0
      %295 = vmatprep.subr.bf16.mxu0 0
      %296 = vmatpush1.bf16.msra.mxu0 0
      %297 = vmatprep.subr.bf16.mxu0 0
      %298 = vmatpush1.bf16.msra.mxu0 0
      %299 = vmatprep.subr.bf16.mxu0 0
      %300 = vmatpush1.bf16.msra.mxu0 0
      %301 = vmatprep.subr.bf16.mxu0 0
      %302 = vmatpush1.bf16.msra.mxu0 0
      %303 = vmatprep.subr.bf16.mxu0 0
      %304 = vmatpush1.bf16.msra.mxu0 0
      %305 = vmatprep.subr.bf16.mxu0 0
      %306 = vmatpush1.bf16.msra.mxu0 0
      %307 = vmatprep.subr.bf16.mxu0 0
      %308 = vmatpush1.bf16.msra.mxu0 0
      %309 = vmatprep.subr.bf16.mxu0 0
      %310 = vmatpush1.bf16.msra.mxu0 0
      %311 = vmatprep.mubr.bf16.mxu0 0
      %312 = vmatmul.mubr.bf16.gmra.mrb[0].mxu0 %v234
      %v313 = vpop.f32.mrb[0].mxu0
      %v314 = vadd.f32 0.0, %v313
      %v315 = vpop.f32.mrb[0].mxu0
      %v316 = vpop.f32.mrb[0].mxu0
      %v317 = vadd.f32 0.0, %v316
      %v318 = vpop.f32.mrb[0].mxu0
      %319 = vmatprep.mubr.bf16.mxu0 0
      %320 = vmatmul.mubr.bf16.gmra.mrb[0].mxu0 %v237
      %v321 = vpop.f32.mrb[0].mxu0
      %v322 = vadd.f32 0.0, %v321
      %v323 = vpop.f32.mrb[0].mxu0
      %v324 = vpop.f32.mrb[0].mxu0
      %v325 = vadd.f32 0.0, %v324
      %v326 = vpop.f32.mrb[0].mxu0
      %327 = vmatprep.mubr.bf16.mxu0 0
      %328 = vmatmul.mubr.bf16.gmra.mrb[0].mxu0 %v240
      %v329 = vpop.f32.mrb[0].mxu0
      %v330 = vadd.f32 0.0, %v329
      %v331 = vpop.f32.mrb[0].mxu0
      %v332 = vpop.f32.mrb[0].mxu0
      %v333 = vadd.f32 0.0, %v332
      %v334 = vpop.f32.mrb[0].mxu0
      %335 = vmatprep.mubr.bf16.mxu0 0
      %336 = vmatmul.mubr.bf16.gmra.mrb[0].mxu0 %v243
      %v337 = vpop.f32.mrb[0].mxu0
      %v338 = vadd.f32 0.0, %v337
      %v339 = vpop.f32.mrb[0].mxu0
      %v340 = vpop.f32.mrb[0].mxu0
      %v341 = vadd.f32 0.0, %v340
      %v342 = vpop.f32.mrb[0].mxu0
      %343 = vmatprep.mubr.bf16.mxu0 0
      %344 = vmatmul.mubr.bf16.gmra.mrb[0].mxu0 %v246
      %v345 = vpop.f32.mrb[0].mxu0
      %v346 = vadd.f32 0.0, %v345
      %v347 = vpop.f32.mrb[0].mxu0
      %v348 = vpop.f32.mrb[0].mxu0
      %v349 = vadd.f32 0.0, %v348
      %v350 = vpop.f32.mrb[0].mxu0
      %351 = vmatprep.mubr.bf16.mxu0 0
      %352 = vmatmul.mubr.bf16.gmra.mrb[0].mxu0 %v249
      %v353 = vpop.f32.mrb[0].mxu0
      %v354 = vadd.f32 0.0, %v353
      %v355 = vpop.f32.mrb[0].mxu0
      %v356 = vpop.f32.mrb[0].mxu0
      %v357 = vadd.f32 0.0, %v356
      %v358 = vpop.f32.mrb[0].mxu0
      %359 = vmatprep.mubr.bf16.mxu0 0
      %360 = vmatmul.mubr.bf16.gmra.mrb[0].mxu0 %v252
      %v361 = vpop.f32.mrb[0].mxu0
      %v362 = vadd.f32 0.0, %v361
      %v363 = vpop.f32.mrb[0].mxu0
      %v364 = vpop.f32.mrb[0].mxu0
      %v365 = vadd.f32 0.0, %v364
      %v366 = vpop.f32.mrb[0].mxu0
      %367 = vmatprep.mubr.bf16.mxu0 0
      %368 = vmatmul.mubr.bf16.gmra.mrb[0].mxu0 %v255
      %v369 = vpop.f32.mrb[0].mxu0
      %v370 = vadd.f32 0.0, %v369
      %v371 = vpop.f32.mrb[0].mxu0
      %v372 = vpop.f32.mrb[0].mxu0
      %v373 = vadd.f32 0.0, %v372
      %v374 = vpop.f32.mrb[0].mxu0
      %375 = vmatprep.mubr.bf16.mxu0 0
      %376 = vmatmul.mubr.bf16.gmra.mrb[0].mxu0 %v258
      %v377 = vpop.f32.mrb[0].mxu0
      %v378 = vadd.f32 0.0, %v377
      %v379 = vpop.f32.mrb[0].mxu0
      %v380 = vpop.f32.mrb[0].mxu0
      %v381 = vadd.f32 0.0, %v380
      %v382 = vpop.f32.mrb[0].mxu0
      %383 = vmatprep.mubr.bf16.mxu0 0
      %384 = vmatmul.mubr.bf16.gmra.mrb[0].mxu0 %v261
      %v385 = vpop.f32.mrb[0].mxu0
      %v386 = vadd.f32 0.0, %v385
      %v387 = vpop.f32.mrb[0].mxu0
      %v388 = vpop.f32.mrb[0].mxu0
      %v389 = vadd.f32 0.0, %v388
      %v390 = vpop.f32.mrb[0].mxu0
      %391 = vmatprep.mubr.bf16.mxu0 0
      %392 = vmatmul.mubr.bf16.gmra.mrb[0].mxu0 %v264
      %v393 = vpop.f32.mrb[0].mxu0
      %v394 = vadd.f32 0.0, %v393
      %v395 = vpop.f32.mrb[0].mxu0
      %v396 = vpop.f32.mrb[0].mxu0
      %v397 = vadd.f32 0.0, %v396
      %v398 = vpop.f32.mrb[0].mxu0
      %399 = vmatprep.mubr.bf16.mxu0 0
      %400 = vmatmul.mubr.bf16.gmra.mrb[0].mxu0 %v267
      %v401 = vpop.f32.mrb[0].mxu0
      %v402 = vadd.f32 0.0, %v401
      %v403 = vpop.f32.mrb[0].mxu0
      %v404 = vpop.f32.mrb[0].mxu0
      %v405 = vadd.f32 0.0, %v404
      %v406 = vpop.f32.mrb[0].mxu0
      %407 = vmatprep.mubr.bf16.mxu0 0
      %408 = vmatmul.mubr.bf16.gmra.mrb[0].mxu0 %v270
      %v409 = vpop.f32.mrb[0].mxu0
      %v410 = vadd.f32 0.0, %v409
      %v411 = vpop.f32.mrb[0].mxu0
      %v412 = vpop.f32.mrb[0].mxu0
      %v413 = vadd.f32 0.0, %v412
      %v414 = vpop.f32.mrb[0].mxu0
      %415 = vmatprep.mubr.bf16.mxu0 0
      %416 = vmatmul.mubr.bf16.gmra.mrb[0].mxu0 %v273
      %v417 = vpop.f32.mrb[0].mxu0
      %v418 = vadd.f32 0.0, %v417
      %v419 = vpop.f32.mrb[0].mxu0
      %v420 = vpop.f32.mrb[0].mxu0
      %v421 = vadd.f32 0.0, %v420
      %v422 = vpop.f32.mrb[0].mxu0
      %423 = vdwg.mxu0
      %v425 = vsel %vm232, %v173, 0
      %v428 = vsel %vm232, %v174, 0
      %v431 = vsel %vm232, %v175, 0
      %v434 = vsel %vm232, %v176, 0
      %v437 = vsel %vm232, %v177, 0
      %v440 = vsel %vm232, %v178, 0
      %v443 = vsel %vm232, %v179, 0
      %v446 = vsel %vm232, %v180, 0
      %v449 = vsel %vm232, %v181, 0
      %v452 = vsel %vm232, %v182, 0
      %v455 = vsel %vm232, %v183, 0
      %v458 = vsel %vm232, %v184, 0
      %v461 = vsel %vm232, %v185, 0
      %v464 = vsel %vm232, %v186, 0
      %v467 = vsel %vm275, %v187, 0
      %469 = vmatprep.subr.bf16.mxu0 0
      %470 = vmatpush1.bf16.msra.mxu0 %v467
      %471 = vmatprep.subr.bf16.mxu0 0
      %472 = vmatpush1.bf16.msra.mxu0 0
      %473 = vmatprep.subr.bf16.mxu0 0
      %474 = vmatpush1.bf16.msra.mxu0 0
      %475 = vmatprep.subr.bf16.mxu0 0
      %476 = vmatpush1.bf16.msra.mxu0 0
      %477 = vmatprep.subr.bf16.mxu0 0
      %478 = vmatpush1.bf16.msra.mxu0 0
      %479 = vmatprep.subr.bf16.mxu0 0
      %480 = vmatpush1.bf16.msra.mxu0 0
      %481 = vmatprep.subr.bf16.mxu0 0
      %482 = vmatpush1.bf16.msra.mxu0 0
      %483 = vmatprep.subr.bf16.mxu0 0
      %484 = vmatpush1.bf16.msra.mxu0 0
      %485 = vmatprep.subr.bf16.mxu0 0
      %486 = vmatpush1.bf16.msra.mxu0 0
      %487 = vmatprep.subr.bf16.mxu0 0
      %488 = vmatpush1.bf16.msra.mxu0 0
      %489 = vmatprep.subr.bf16.mxu0 0
      %490 = vmatpush1.bf16.msra.mxu0 0
      %491 = vmatprep.subr.bf16.mxu0 0
      %492 = vmatpush1.bf16.msra.mxu0 0
      %493 = vmatprep.subr.bf16.mxu0 0
      %494 = vmatpush1.bf16.msra.mxu0 0
      %495 = vmatprep.subr.bf16.mxu0 0
      %496 = vmatpush1.bf16.msra.mxu0 0
      %497 = vmatprep.subr.bf16.mxu0 0
      %498 = vmatpush1.bf16.msra.mxu0 0
      %499 = vmatprep.subr.bf16.mxu0 0
      %500 = vmatpush1.bf16.msra.mxu0 0
      %501 = vmatprep.mubr.bf16.mxu0 0
      %502 = vmatmul.mubr.bf16.gmra.mrb[0].mxu0 %v425
      %v503 = vpop.f32.mrb[0].mxu0
      %v504 = vadd.f32 %v314, %v503
      %v505 = vpop.f32.mrb[0].mxu0
      %v506 = vpop.f32.mrb[0].mxu0
      %v507 = vadd.f32 %v317, %v506
      %v508 = vpop.f32.mrb[0].mxu0
      %509 = vmatprep.mubr.bf16.mxu0 0
      %510 = vmatmul.mubr.bf16.gmra.mrb[0].mxu0 %v428
      %v511 = vpop.f32.mrb[0].mxu0
      %v512 = vadd.f32 %v322, %v511
      %v513 = vpop.f32.mrb[0].mxu0
      %v514 = vpop.f32.mrb[0].mxu0
      %v515 = vadd.f32 %v325, %v514
      %v516 = vpop.f32.mrb[0].mxu0
      %517 = vmatprep.mubr.bf16.mxu0 0
      %518 = vmatmul.mubr.bf16.gmra.mrb[0].mxu0 %v431
      %v519 = vpop.f32.mrb[0].mxu0
      %v520 = vadd.f32 %v330, %v519
      %v521 = vpop.f32.mrb[0].mxu0
      %v522 = vpop.f32.mrb[0].mxu0
      %v523 = vadd.f32 %v333, %v522
      %v524 = vpop.f32.mrb[0].mxu0
      %525 = vmatprep.mubr.bf16.mxu0 0
      %526 = vmatmul.mubr.bf16.gmra.mrb[0].mxu0 %v434
      %v527 = vpop.f32.mrb[0].mxu0
      %v528 = vadd.f32 %v338, %v527
      %v529 = vpop.f32.mrb[0].mxu0
      %v530 = vpop.f32.mrb[0].mxu0
      %v531 = vadd.f32 %v341, %v530
      %v532 = vpop.f32.mrb[0].mxu0
      %533 = vmatprep.mubr.bf16.mxu0 0
      %534 = vmatmul.mubr.bf16.gmra.mrb[0].mxu0 %v437
      %v535 = vpop.f32.mrb[0].mxu0
      %v536 = vadd.f32 %v346, %v535
      %v537 = vpop.f32.mrb[0].mxu0
      %v538 = vpop.f32.mrb[0].mxu0
      %v539 = vadd.f32 %v349, %v538
      %v540 = vpop.f32.mrb[0].mxu0
      %541 = vmatprep.mubr.bf16.mxu0 0
      %542 = vmatmul.mubr.bf16.gmra.mrb[0].mxu0 %v440
      %v543 = vpop.f32.mrb[0].mxu0
      %v544 = vadd.f32 %v354, %v543
      %v545 = vpop.f32.mrb[0].mxu0
      %v546 = vpop.f32.mrb[0].mxu0
      %v547 = vadd.f32 %v357, %v546
      %v548 = vpop.f32.mrb[0].mxu0
      %549 = vmatprep.mubr.bf16.mxu0 0
      %550 = vmatmul.mubr.bf16.gmra.mrb[0].mxu0 %v443
      %v551 = vpop.f32.mrb[0].mxu0
      %v552 = vadd.f32 %v362, %v551
      %v553 = vpop.f32.mrb[0].mxu0
      %v554 = vpop.f32.mrb[0].mxu0
      %v555 = vadd.f32 %v365, %v554
      %v556 = vpop.f32.mrb[0].mxu0
      %557 = vmatprep.mubr.bf16.mxu0 0
      %558 = vmatmul.mubr.bf16.gmra.mrb[0].mxu0 %v446
      %v559 = vpop.f32.mrb[0].mxu0
      %v560 = vadd.f32 %v370, %v559
      %v561 = vpop.f32.mrb[0].mxu0
      %v562 = vpop.f32.mrb[0].mxu0
      %v563 = vadd.f32 %v373, %v562
      %v564 = vpop.f32.mrb[0].mxu0
      %565 = vmatprep.mubr.bf16.mxu0 0
      %566 = vmatmul.mubr.bf16.gmra.mrb[0].mxu0 %v449
      %v567 = vpop.f32.mrb[0].mxu0
      %v568 = vadd.f32 %v378, %v567
      %v569 = vpop.f32.mrb[0].mxu0
      %v570 = vpop.f32.mrb[0].mxu0
      %v571 = vadd.f32 %v381, %v570
      %v572 = vpop.f32.mrb[0].mxu0
      %573 = vmatprep.mubr.bf16.mxu0 0
      %574 = vmatmul.mubr.bf16.gmra.mrb[0].mxu0 %v452
      %v575 = vpop.f32.mrb[0].mxu0
      %v576 = vadd.f32 %v386, %v575
      %v577 = vpop.f32.mrb[0].mxu0
      %v578 = vpop.f32.mrb[0].mxu0
      %v579 = vadd.f32 %v389, %v578
      %v580 = vpop.f32.mrb[0].mxu0
      %581 = vmatprep.mubr.bf16.mxu0 0
      %582 = vmatmul.mubr.bf16.gmra.mrb[0].mxu0 %v455
      %v583 = vpop.f32.mrb[0].mxu0
      %v584 = vadd.f32 %v394, %v583
      %v585 = vpop.f32.mrb[0].mxu0
      %v586 = vpop.f32.mrb[0].mxu0
      %v587 = vadd.f32 %v397, %v586
      %v588 = vpop.f32.mrb[0].mxu0
      %589 = vmatprep.mubr.bf16.mxu0 0
      %590 = vmatmul.mubr.bf16.gmra.mrb[0].mxu0 %v458
      %v591 = vpop.f32.mrb[0].mxu0
      %v592 = vadd.f32 %v402, %v591
      %v593 = vpop.f32.mrb[0].mxu0
      %v594 = vpop.f32.mrb[0].mxu0
      %v595 = vadd.f32 %v405, %v594
      %v596 = vpop.f32.mrb[0].mxu0
      %597 = vmatprep.mubr.bf16.mxu0 0
      %598 = vmatmul.mubr.bf16.gmra.mrb[0].mxu0 %v461
      %v599 = vpop.f32.mrb[0].mxu0
      %v600 = vadd.f32 %v410, %v599
      %v601 = vpop.f32.mrb[0].mxu0
      %v602 = vpop.f32.mrb[0].mxu0
      %v603 = vadd.f32 %v413, %v602
      %v604 = vpop.f32.mrb[0].mxu0
      %605 = vmatprep.mubr.bf16.mxu0 0
      %606 = vmatmul.mubr.bf16.gmra.mrb[0].mxu0 %v464
      %v607 = vpop.f32.mrb[0].mxu0
      %v608 = vadd.f32 %v418, %v607
      %v609 = vpop.f32.mrb[0].mxu0
      %v610 = vpop.f32.mrb[0].mxu0
      %v611 = vadd.f32 %v421, %v610
      %v612 = vpop.f32.mrb[0].mxu0
      %613 = vdwg.mxu0
      %v614 = vld [vmem:[%s138 + $0x2] sm:$0xff]
      %v615 = vld [vmem:[%s138 + $0xa] sm:$0xff]
      %v616 = vld [vmem:[%s138 + $0x12] sm:$0xff]
      %v617 = vld [vmem:[%s138 + $0x1a] sm:$0xff]
      %v618 = vld [vmem:[%s138 + $0x22] sm:$0xff]
      %v619 = vld [vmem:[%s138 + $0x2a] sm:$0xff]
      %v620 = vld [vmem:[%s138 + $0x32] sm:$0xff]
      %v621 = vld [vmem:[%s138 + $0x3a] sm:$0xff]
      %v622 = vld [vmem:[%s138 + $0x42] sm:$0xff]
      %v623 = vld [vmem:[%s138 + $0x4a] sm:$0xff]
      %v624 = vld [vmem:[%s138 + $0x52] sm:$0xff]
      %v625 = vld [vmem:[%s138 + $0x5a] sm:$0xff]
      %v626 = vld [vmem:[%s138 + $0x62] sm:$0xff]
      %v627 = vld [vmem:[%s138 + $0x6a] sm:$0xff]
      %v628 = vld [vmem:[%s138 + $0x72] sm:$0xff]
      %v629 = vld [vmem:[%s138 + $0x7a] sm:$0xff]
      %v630 = vld [vmem:[%s138 + $0x82] sm:$0xff]
      %v631 = vld [vmem:[%s138 + $0x8a] sm:$0xff]
      %v632 = vld [vmem:[%s138 + $0x92] sm:$0xff]
      %v633 = vld [vmem:[%s138 + $0x9a] sm:$0xff]
      %v634 = vld [vmem:[%s138 + $0xa2] sm:$0xff]
      %v635 = vld [vmem:[%s138 + $0xaa] sm:$0xff]
      %v636 = vld [vmem:[%s138 + $0xb2] sm:$0xff]
      %v637 = vld [vmem:[%s138 + $0xba] sm:$0xff]
      %v638 = vld [vmem:[%s138 + $0xc2] sm:$0xff]
      %v639 = vld [vmem:[%s138 + $0xca] sm:$0xff]
      %v640 = vld [vmem:[%s138 + $0xd2] sm:$0xff]
      %v641 = vld [vmem:[%s138 + $0xda] sm:$0xff]
      %v642 = vpack.c.bf16 %v615, %v614
      %v643 = vpack.c.bf16 %v617, %v616
      %v644 = vpack.c.bf16 %v619, %v618
      %v645 = vpack.c.bf16 %v621, %v620
      %v646 = vpack.c.bf16 %v623, %v622
      %v647 = vpack.c.bf16 %v625, %v624
      %v648 = vpack.c.bf16 %v627, %v626
      %v649 = vpack.c.bf16 %v629, %v628
      %v650 = vpack.c.bf16 %v631, %v630
      %v651 = vpack.c.bf16 %v633, %v632
      %v652 = vpack.c.bf16 %v635, %v634
      %v653 = vpack.c.bf16 %v637, %v636
      %v654 = vpack.c.bf16 %v639, %v638
      %v655 = vpack.c.bf16 %v641, %v640
      %s656 = scalar_lea.vmem %s1, 8
      %v657 = vld [vmem:[%s656] sm:$0xf]
      %v659 = vsel %vm232, %v642, 0
      %v662 = vsel %vm232, %v643, 0
      %v665 = vsel %vm232, %v644, 0
      %v668 = vsel %vm232, %v645, 0
      %v671 = vsel %vm232, %v646, 0
      %v674 = vsel %vm232, %v647, 0
      %v677 = vsel %vm232, %v648, 0
      %v680 = vsel %vm232, %v649, 0
      %v683 = vsel %vm232, %v650, 0
      %v686 = vsel %vm232, %v651, 0
      %v689 = vsel %vm232, %v652, 0
      %v692 = vsel %vm232, %v653, 0
      %v695 = vsel %vm232, %v654, 0
      %v698 = vsel %vm232, %v655, 0
      %v701 = vsel %vm275, %v657, 0
      %703 = vmatprep.subr.bf16.mxu0 0
      %704 = vmatpush1.bf16.msra.mxu0 %v701
      %705 = vmatprep.subr.bf16.mxu0 0
      %706 = vmatpush1.bf16.msra.mxu0 0
      %707 = vmatprep.subr.bf16.mxu0 0
      %708 = vmatpush1.bf16.msra.mxu0 0
      %709 = vmatprep.subr.bf16.mxu0 0
      %710 = vmatpush1.bf16.msra.mxu0 0
      %711 = vmatprep.subr.bf16.mxu0 0
      %712 = vmatpush1.bf16.msra.mxu0 0
      %713 = vmatprep.subr.bf16.mxu0 0
      %714 = vmatpush1.bf16.msra.mxu0 0
      %715 = vmatprep.subr.bf16.mxu0 0
      %716 = vmatpush1.bf16.msra.mxu0 0
      %717 = vmatprep.subr.bf16.mxu0 0
      %718 = vmatpush1.bf16.msra.mxu0 0
      %719 = vmatprep.subr.bf16.mxu0 0
      %720 = vmatpush1.bf16.msra.mxu0 0
      %721 = vmatprep.subr.bf16.mxu0 0
      %722 = vmatpush1.bf16.msra.mxu0 0
      %723 = vmatprep.subr.bf16.mxu0 0
      %724 = vmatpush1.bf16.msra.mxu0 0
      %725 = vmatprep.subr.bf16.mxu0 0
      %726 = vmatpush1.bf16.msra.mxu0 0
      %727 = vmatprep.subr.bf16.mxu0 0
      %728 = vmatpush1.bf16.msra.mxu0 0
      %729 = vmatprep.subr.bf16.mxu0 0
      %730 = vmatpush1.bf16.msra.mxu0 0
      %731 = vmatprep.subr.bf16.mxu0 0
      %732 = vmatpush1.bf16.msra.mxu0 0
      %733 = vmatprep.subr.bf16.mxu0 0
      %734 = vmatpush1.bf16.msra.mxu0 0
      %735 = vmatprep.mubr.bf16.mxu0 0
      %736 = vmatmul.mubr.bf16.gmra.mrb[0].mxu0 %v659
      %v737 = vpop.f32.mrb[0].mxu0
      %v738 = vadd.f32 0.0, %v737
      %v739 = vpop.f32.mrb[0].mxu0
      %v740 = vpop.f32.mrb[0].mxu0
      %v741 = vadd.f32 0.0, %v740
      %v742 = vpop.f32.mrb[0].mxu0
      %743 = vmatprep.mubr.bf16.mxu0 0
      %744 = vmatmul.mubr.bf16.gmra.mrb[0].mxu0 %v662
      %v745 = vpop.f32.mrb[0].mxu0
      %v746 = vadd.f32 0.0, %v745
      %v747 = vpop.f32.mrb[0].mxu0
      %v748 = vpop.f32.mrb[0].mxu0
      %v749 = vadd.f32 0.0, %v748
      %v750 = vpop.f32.mrb[0].mxu0
      %751 = vmatprep.mubr.bf16.mxu0 0
      %752 = vmatmul.mubr.bf16.gmra.mrb[0].mxu0 %v665
      %v753 = vpop.f32.mrb[0].mxu0
      %v754 = vadd.f32 0.0, %v753
      %v755 = vpop.f32.mrb[0].mxu0
      %v756 = vpop.f32.mrb[0].mxu0
      %v757 = vadd.f32 0.0, %v756
      %v758 = vpop.f32.mrb[0].mxu0
      %759 = vmatprep.mubr.bf16.mxu0 0
      %760 = vmatmul.mubr.bf16.gmra.mrb[0].mxu0 %v668
      %v761 = vpop.f32.mrb[0].mxu0
      %v762 = vadd.f32 0.0, %v761
      %v763 = vpop.f32.mrb[0].mxu0
      %v764 = vpop.f32.mrb[0].mxu0
      %v765 = vadd.f32 0.0, %v764
      %v766 = vpop.f32.mrb[0].mxu0
      %767 = vmatprep.mubr.bf16.mxu0 0
      %768 = vmatmul.mubr.bf16.gmra.mrb[0].mxu0 %v671
      %v769 = vpop.f32.mrb[0].mxu0
      %v770 = vadd.f32 0.0, %v769
      %v771 = vpop.f32.mrb[0].mxu0
      %v772 = vpop.f32.mrb[0].mxu0
      %v773 = vadd.f32 0.0, %v772
      %v774 = vpop.f32.mrb[0].mxu0
      %775 = vmatprep.mubr.bf16.mxu0 0
      %776 = vmatmul.mubr.bf16.gmra.mrb[0].mxu0 %v674
      %v777 = vpop.f32.mrb[0].mxu0
      %v778 = vadd.f32 0.0, %v777
      %v779 = vpop.f32.mrb[0].mxu0
      %v780 = vpop.f32.mrb[0].mxu0
      %v781 = vadd.f32 0.0, %v780
      %v782 = vpop.f32.mrb[0].mxu0
      %783 = vmatprep.mubr.bf16.mxu0 0
      %784 = vmatmul.mubr.bf16.gmra.mrb[0].mxu0 %v677
      %v785 = vpop.f32.mrb[0].mxu0
      %v786 = vadd.f32 0.0, %v785
      %v787 = vpop.f32.mrb[0].mxu0
      %v788 = vpop.f32.mrb[0].mxu0
      %v789 = vadd.f32 0.0, %v788
      %v790 = vpop.f32.mrb[0].mxu0
      %791 = vmatprep.mubr.bf16.mxu0 0
      %792 = vmatmul.mubr.bf16.gmra.mrb[0].mxu0 %v680
      %v793 = vpop.f32.mrb[0].mxu0
      %v794 = vadd.f32 0.0, %v793
      %v795 = vpop.f32.mrb[0].mxu0
      %v796 = vpop.f32.mrb[0].mxu0
      %v797 = vadd.f32 0.0, %v796
      %v798 = vpop.f32.mrb[0].mxu0
      %799 = vmatprep.mubr.bf16.mxu0 0
      %800 = vmatmul.mubr.bf16.gmra.mrb[0].mxu0 %v683
      %v801 = vpop.f32.mrb[0].mxu0
      %v802 = vadd.f32 0.0, %v801
      %v803 = vpop.f32.mrb[0].mxu0
      %v804 = vpop.f32.mrb[0].mxu0
      %v805 = vadd.f32 0.0, %v804
      %v806 = vpop.f32.mrb[0].mxu0
      %807 = vmatprep.mubr.bf16.mxu0 0
      %808 = vmatmul.mubr.bf16.gmra.mrb[0].mxu0 %v686
      %v809 = vpop.f32.mrb[0].mxu0
      %v810 = vadd.f32 0.0, %v809
      %v811 = vpop.f32.mrb[0].mxu0
      %v812 = vpop.f32.mrb[0].mxu0
      %v813 = vadd.f32 0.0, %v812
      %v814 = vpop.f32.mrb[0].mxu0
      %815 = vmatprep.mubr.bf16.mxu0 0
      %816 = vmatmul.mubr.bf16.gmra.mrb[0].mxu0 %v689
      %v817 = vpop.f32.mrb[0].mxu0
      %v818 = vadd.f32 0.0, %v817
      %v819 = vpop.f32.mrb[0].mxu0
      %v820 = vpop.f32.mrb[0].mxu0
      %v821 = vadd.f32 0.0, %v820
      %v822 = vpop.f32.mrb[0].mxu0
      %823 = vmatprep.mubr.bf16.mxu0 0
      %824 = vmatmul.mubr.bf16.gmra.mrb[0].mxu0 %v692
      %v825 = vpop.f32.mrb[0].mxu0
      %v826 = vadd.f32 0.0, %v825
      %v827 = vpop.f32.mrb[0].mxu0
      %v828 = vpop.f32.mrb[0].mxu0
      %v829 = vadd.f32 0.0, %v828
      %v830 = vpop.f32.mrb[0].mxu0
      %831 = vmatprep.mubr.bf16.mxu0 0
      %832 = vmatmul.mubr.bf16.gmra.mrb[0].mxu0 %v695
      %v833 = vpop.f32.mrb[0].mxu0
      %v834 = vadd.f32 0.0, %v833
      %v835 = vpop.f32.mrb[0].mxu0
      %v836 = vpop.f32.mrb[0].mxu0
      %v837 = vadd.f32 0.0, %v836
      %v838 = vpop.f32.mrb[0].mxu0
      %839 = vmatprep.mubr.bf16.mxu0 0
      %840 = vmatmul.mubr.bf16.gmra.mrb[0].mxu0 %v698
      %v841 = vpop.f32.mrb[0].mxu0
      %v842 = vadd.f32 0.0, %v841
      %v843 = vpop.f32.mrb[0].mxu0
      %v844 = vpop.f32.mrb[0].mxu0
      %v845 = vadd.f32 0.0, %v844
      %v846 = vpop.f32.mrb[0].mxu0
      %847 = vdwg.mxu0
      %v848 = vadd.f32 %v504, %v738
      %v849 = vadd.f32 %v507, %v741
      %v850 = vadd.f32 %v512, %v746
      %v851 = vadd.f32 %v515, %v749
      %v852 = vadd.f32 %v520, %v754
      %v853 = vadd.f32 %v523, %v757
      %v854 = vadd.f32 %v528, %v762
      %v855 = vadd.f32 %v531, %v765
      %v856 = vadd.f32 %v536, %v770
      %v857 = vadd.f32 %v539, %v773
      %v858 = vadd.f32 %v544, %v778
      %v859 = vadd.f32 %v547, %v781
      %v860 = vadd.f32 %v552, %v786
      %v861 = vadd.f32 %v555, %v789
      %v862 = vadd.f32 %v560, %v794
      %v863 = vadd.f32 %v563, %v797
      %v864 = vadd.f32 %v568, %v802
      %v865 = vadd.f32 %v571, %v805
      %v866 = vadd.f32 %v576, %v810
      %v867 = vadd.f32 %v579, %v813
      %v868 = vadd.f32 %v584, %v818
      %v869 = vadd.f32 %v587, %v821
      %v870 = vadd.f32 %v592, %v826
      %v871 = vadd.f32 %v595, %v829
      %v872 = vadd.f32 %v600, %v834
      %v873 = vadd.f32 %v603, %v837
      %v874 = vadd.f32 %v608, %v842
      %v875 = vadd.f32 %v611, %v845
      %v876 = vld [vmem:[%s138 + $0x10] sm:$0xff]
      %v877 = vld [vmem:[%s138 + $0x18] sm:$0xff]
      %v878 = vld [vmem:[%s138 + $0x20] sm:$0xff]
      %v879 = vld [vmem:[%s138 + $0x28] sm:$0xff]
      %v880 = vld [vmem:[%s138 + $0x30] sm:$0xff]
      %v881 = vld [vmem:[%s138 + $0x38] sm:$0xff]
      %v882 = vld [vmem:[%s138 + $0x40] sm:$0xff]
      %v883 = vld [vmem:[%s138 + $0x48] sm:$0xff]
      %v884 = vld [vmem:[%s138 + $0x50] sm:$0xff]
      %v885 = vld [vmem:[%s138 + $0x58] sm:$0xff]
      %v886 = vld [vmem:[%s138 + $0x60] sm:$0xff]
      %v887 = vld [vmem:[%s138 + $0x68] sm:$0xff]
      %v888 = vld [vmem:[%s138 + $0x70] sm:$0xff]
      %v889 = vld [vmem:[%s138 + $0x78] sm:$0xff]
      %v890 = vld [vmem:[%s138 + $0x80] sm:$0xff]
      %v891 = vld [vmem:[%s138 + $0x88] sm:$0xff]
      %v892 = vld [vmem:[%s138 + $0x90] sm:$0xff]
      %v893 = vld [vmem:[%s138 + $0x98] sm:$0xff]
      %v894 = vld [vmem:[%s138 + $0xa0] sm:$0xff]
      %v895 = vld [vmem:[%s138 + $0xa8] sm:$0xff]
      %v896 = vld [vmem:[%s138 + $0xb0] sm:$0xff]
      %v897 = vld [vmem:[%s138 + $0xb8] sm:$0xff]
      %v898 = vld [vmem:[%s138 + $0xc0] sm:$0xff]
      %v899 = vld [vmem:[%s138 + $0xc8] sm:$0xff]
      %v900 = vld [vmem:[%s138 + $0xd0] sm:$0xff]
      %v901 = vld [vmem:[%s138 + $0xd8] sm:$0xff]
      %v902 = vld [vmem:[%s138 + $0xe0] sm:$0xff]
      %v903 = vld [vmem:[%s138 + $0xe8] sm:$0xff]
      %v904 = vpack.c.bf16 %v877, %v876
      %v905 = vpack.c.bf16 %v879, %v878
      %v906 = vpack.c.bf16 %v881, %v880
      %v907 = vpack.c.bf16 %v883, %v882
      %v908 = vpack.c.bf16 %v885, %v884
      %v909 = vpack.c.bf16 %v887, %v886
      %v910 = vpack.c.bf16 %v889, %v888
      %v911 = vpack.c.bf16 %v891, %v890
      %v912 = vpack.c.bf16 %v893, %v892
      %v913 = vpack.c.bf16 %v895, %v894
      %v914 = vpack.c.bf16 %v897, %v896
      %v915 = vpack.c.bf16 %v899, %v898
      %v916 = vpack.c.bf16 %v901, %v900
      %v917 = vpack.c.bf16 %v903, %v902
      %s918 = scalar_lea.vmem %s1, 12
      %v919 = vld [vmem:[%s918] sm:$0xf]
      %v921 = vsel %vm232, %v904, 0
      %v924 = vsel %vm232, %v905, 0
      %v927 = vsel %vm232, %v906, 0
      %v930 = vsel %vm232, %v907, 0
      %v933 = vsel %vm232, %v908, 0
      %v936 = vsel %vm232, %v909, 0
      %v939 = vsel %vm232, %v910, 0
      %v942 = vsel %vm232, %v911, 0
      %v945 = vsel %vm232, %v912, 0
      %v948 = vsel %vm232, %v913, 0
      %v951 = vsel %vm232, %v914, 0
      %v954 = vsel %vm232, %v915, 0
      %v957 = vsel %vm232, %v916, 0
      %v960 = vsel %vm232, %v917, 0
      %v963 = vsel %vm275, %v919, 0
      %965 = vmatprep.subr.bf16.mxu0 0
      %966 = vmatpush1.bf16.msra.mxu0 %v963
      %967 = vmatprep.subr.bf16.mxu0 0
      %968 = vmatpush1.bf16.msra.mxu0 0
      %969 = vmatprep.subr.bf16.mxu0 0
      %970 = vmatpush1.bf16.msra.mxu0 0
      %971 = vmatprep.subr.bf16.mxu0 0
      %972 = vmatpush1.bf16.msra.mxu0 0
      %973 = vmatprep.subr.bf16.mxu0 0
      %974 = vmatpush1.bf16.msra.mxu0 0
      %975 = vmatprep.subr.bf16.mxu0 0
      %976 = vmatpush1.bf16.msra.mxu0 0
      %977 = vmatprep.subr.bf16.mxu0 0
      %978 = vmatpush1.bf16.msra.mxu0 0
      %979 = vmatprep.subr.bf16.mxu0 0
      %980 = vmatpush1.bf16.msra.mxu0 0
      %981 = vmatprep.subr.bf16.mxu0 0
      %982 = vmatpush1.bf16.msra.mxu0 0
      %983 = vmatprep.subr.bf16.mxu0 0
      %984 = vmatpush1.bf16.msra.mxu0 0
      %985 = vmatprep.subr.bf16.mxu0 0
      %986 = vmatpush1.bf16.msra.mxu0 0
      %987 = vmatprep.subr.bf16.mxu0 0
      %988 = vmatpush1.bf16.msra.mxu0 0
      %989 = vmatprep.subr.bf16.mxu0 0
      %990 = vmatpush1.bf16.msra.mxu0 0
      %991 = vmatprep.subr.bf16.mxu0 0
      %992 = vmatpush1.bf16.msra.mxu0 0
      %993 = vmatprep.subr.bf16.mxu0 0
      %994 = vmatpush1.bf16.msra.mxu0 0
      %995 = vmatprep.subr.bf16.mxu0 0
      %996 = vmatpush1.bf16.msra.mxu0 0
      %997 = vmatprep.mubr.bf16.mxu0 0
      %998 = vmatmul.mubr.bf16.gmra.mrb[0].mxu0 %v921
      %v999 = vpop.f32.mrb[0].mxu0
      %v1000 = vadd.f32 0.0, %v999
      %v1001 = vpop.f32.mrb[0].mxu0
      %v1002 = vpop.f32.mrb[0].mxu0
      %v1003 = vadd.f32 0.0, %v1002
      %v1004 = vpop.f32.mrb[0].mxu0
      %1005 = vmatprep.mubr.bf16.mxu0 0
      %1006 = vmatmul.mubr.bf16.gmra.mrb[0].mxu0 %v924
      %v1007 = vpop.f32.mrb[0].mxu0
      %v1008 = vadd.f32 0.0, %v1007
      %v1009 = vpop.f32.mrb[0].mxu0
      %v1010 = vpop.f32.mrb[0].mxu0
      %v1011 = vadd.f32 0.0, %v1010
      %v1012 = vpop.f32.mrb[0].mxu0
      %1013 = vmatprep.mubr.bf16.mxu0 0
      %1014 = vmatmul.mubr.bf16.gmra.mrb[0].mxu0 %v927
      %v1015 = vpop.f32.mrb[0].mxu0
      %v1016 = vadd.f32 0.0, %v1015
      %v1017 = vpop.f32.mrb[0].mxu0
      %v1018 = vpop.f32.mrb[0].mxu0
      %v1019 = vadd.f32 0.0, %v1018
      %v1020 = vpop.f32.mrb[0].mxu0
      %1021 = vmatprep.mubr.bf16.mxu0 0
      %1022 = vmatmul.mubr.bf16.gmra.mrb[0].mxu0 %v930
      %v1023 = vpop.f32.mrb[0].mxu0
      %v1024 = vadd.f32 0.0, %v1023
      %v1025 = vpop.f32.mrb[0].mxu0
      %v1026 = vpop.f32.mrb[0].mxu0
      %v1027 = vadd.f32 0.0, %v1026
      %v1028 = vpop.f32.mrb[0].mxu0
      %1029 = vmatprep.mubr.bf16.mxu0 0
      %1030 = vmatmul.mubr.bf16.gmra.mrb[0].mxu0 %v933
      %v1031 = vpop.f32.mrb[0].mxu0
      %v1032 = vadd.f32 0.0, %v1031
      %v1033 = vpop.f32.mrb[0].mxu0
      %v1034 = vpop.f32.mrb[0].mxu0
      %v1035 = vadd.f32 0.0, %v1034
      %v1036 = vpop.f32.mrb[0].mxu0
      %1037 = vmatprep.mubr.bf16.mxu0 0
      %1038 = vmatmul.mubr.bf16.gmra.mrb[0].mxu0 %v936
      %v1039 = vpop.f32.mrb[0].mxu0
      %v1040 = vadd.f32 0.0, %v1039
      %v1041 = vpop.f32.mrb[0].mxu0
      %v1042 = vpop.f32.mrb[0].mxu0
      %v1043 = vadd.f32 0.0, %v1042
      %v1044 = vpop.f32.mrb[0].mxu0
      %1045 = vmatprep.mubr.bf16.mxu0 0
      %1046 = vmatmul.mubr.bf16.gmra.mrb[0].mxu0 %v939
      %v1047 = vpop.f32.mrb[0].mxu0
      %v1048 = vadd.f32 0.0, %v1047
      %v1049 = vpop.f32.mrb[0].mxu0
      %v1050 = vpop.f32.mrb[0].mxu0
      %v1051 = vadd.f32 0.0, %v1050
      %v1052 = vpop.f32.mrb[0].mxu0
      %1053 = vmatprep.mubr.bf16.mxu0 0
      %1054 = vmatmul.mubr.bf16.gmra.mrb[0].mxu0 %v942
      %v1055 = vpop.f32.mrb[0].mxu0
      %v1056 = vadd.f32 0.0, %v1055
      %v1057 = vpop.f32.mrb[0].mxu0
      %v1058 = vpop.f32.mrb[0].mxu0
      %v1059 = vadd.f32 0.0, %v1058
      %v1060 = vpop.f32.mrb[0].mxu0
      %1061 = vmatprep.mubr.bf16.mxu0 0
      %1062 = vmatmul.mubr.bf16.gmra.mrb[0].mxu0 %v945
      %v1063 = vpop.f32.mrb[0].mxu0
      %v1064 = vadd.f32 0.0, %v1063
      %v1065 = vpop.f32.mrb[0].mxu0
      %v1066 = vpop.f32.mrb[0].mxu0
      %v1067 = vadd.f32 0.0, %v1066
      %v1068 = vpop.f32.mrb[0].mxu0
      %1069 = vmatprep.mubr.bf16.mxu0 0
      %1070 = vmatmul.mubr.bf16.gmra.mrb[0].mxu0 %v948
      %v1071 = vpop.f32.mrb[0].mxu0
      %v1072 = vadd.f32 0.0, %v1071
      %v1073 = vpop.f32.mrb[0].mxu0
      %v1074 = vpop.f32.mrb[0].mxu0
      %v1075 = vadd.f32 0.0, %v1074
      %v1076 = vpop.f32.mrb[0].mxu0
      %1077 = vmatprep.mubr.bf16.mxu0 0
      %1078 = vmatmul.mubr.bf16.gmra.mrb[0].mxu0 %v951
      %v1079 = vpop.f32.mrb[0].mxu0
      %v1080 = vadd.f32 0.0, %v1079
      %v1081 = vpop.f32.mrb[0].mxu0
      %v1082 = vpop.f32.mrb[0].mxu0
      %v1083 = vadd.f32 0.0, %v1082
      %v1084 = vpop.f32.mrb[0].mxu0
      %1085 = vmatprep.mubr.bf16.mxu0 0
      %1086 = vmatmul.mubr.bf16.gmra.mrb[0].mxu0 %v954
      %v1087 = vpop.f32.mrb[0].mxu0
      %v1088 = vadd.f32 0.0, %v1087
      %v1089 = vpop.f32.mrb[0].mxu0
      %v1090 = vpop.f32.mrb[0].mxu0
      %v1091 = vadd.f32 0.0, %v1090
      %v1092 = vpop.f32.mrb[0].mxu0
      %1093 = vmatprep.mubr.bf16.mxu0 0
      %1094 = vmatmul.mubr.bf16.gmra.mrb[0].mxu0 %v957
      %v1095 = vpop.f32.mrb[0].mxu0
      %v1096 = vadd.f32 0.0, %v1095
      %v1097 = vpop.f32.mrb[0].mxu0
      %v1098 = vpop.f32.mrb[0].mxu0
      %v1099 = vadd.f32 0.0, %v1098
      %v1100 = vpop.f32.mrb[0].mxu0
      %1101 = vmatprep.mubr.bf16.mxu0 0
      %1102 = vmatmul.mubr.bf16.gmra.mrb[0].mxu0 %v960
      %v1103 = vpop.f32.mrb[0].mxu0
      %v1104 = vadd.f32 0.0, %v1103
      %v1105 = vpop.f32.mrb[0].mxu0
      %v1106 = vpop.f32.mrb[0].mxu0
      %v1107 = vadd.f32 0.0, %v1106
      %v1108 = vpop.f32.mrb[0].mxu0
      %1109 = vdwg.mxu0
      %v1110 = vadd.f32 %v848, %v1000
      %v1111 = vadd.f32 %v849, %v1003
      %v1112 = vadd.f32 %v850, %v1008
      %v1113 = vadd.f32 %v851, %v1011
      %v1114 = vadd.f32 %v852, %v1016
      %v1115 = vadd.f32 %v853, %v1019
      %v1116 = vadd.f32 %v854, %v1024
      %v1117 = vadd.f32 %v855, %v1027
      %v1118 = vadd.f32 %v856, %v1032
      %v1119 = vadd.f32 %v857, %v1035
      %v1120 = vadd.f32 %v858, %v1040
      %v1121 = vadd.f32 %v859, %v1043
      %v1122 = vadd.f32 %v860, %v1048
      %v1123 = vadd.f32 %v861, %v1051
      %v1124 = vadd.f32 %v862, %v1056
      %v1125 = vadd.f32 %v863, %v1059
      %v1126 = vadd.f32 %v864, %v1064
      %v1127 = vadd.f32 %v865, %v1067
      %v1128 = vadd.f32 %v866, %v1072
      %v1129 = vadd.f32 %v867, %v1075
      %v1130 = vadd.f32 %v868, %v1080
      %v1131 = vadd.f32 %v869, %v1083
      %v1132 = vadd.f32 %v870, %v1088
      %v1133 = vadd.f32 %v871, %v1091
      %v1134 = vadd.f32 %v872, %v1096
      %v1135 = vadd.f32 %v873, %v1099
      %v1136 = vadd.f32 %v874, %v1104
      %v1137 = vadd.f32 %v875, %v1107
      %v1138 = vld [vmem:[%s138 + $0x11] sm:$0xff]
      %v1139 = vld [vmem:[%s138 + $0x19] sm:$0xff]
      %v1140 = vld [vmem:[%s138 + $0x21] sm:$0xff]
      %v1141 = vld [vmem:[%s138 + $0x29] sm:$0xff]
      %v1142 = vld [vmem:[%s138 + $0x31] sm:$0xff]
      %v1143 = vld [vmem:[%s138 + $0x39] sm:$0xff]
      %v1144 = vld [vmem:[%s138 + $0x41] sm:$0xff]
      %v1145 = vld [vmem:[%s138 + $0x49] sm:$0xff]
      %v1146 = vld [vmem:[%s138 + $0x51] sm:$0xff]
      %v1147 = vld [vmem:[%s138 + $0x59] sm:$0xff]
      %v1148 = vld [vmem:[%s138 + $0x61] sm:$0xff]
      %v1149 = vld [vmem:[%s138 + $0x69] sm:$0xff]
      %v1150 = vld [vmem:[%s138 + $0x71] sm:$0xff]
      %v1151 = vld [vmem:[%s138 + $0x79] sm:$0xff]
      %v1152 = vld [vmem:[%s138 + $0x81] sm:$0xff]
      %v1153 = vld [vmem:[%s138 + $0x89] sm:$0xff]
      %v1154 = vld [vmem:[%s138 + $0x91] sm:$0xff]
      %v1155 = vld [vmem:[%s138 + $0x99] sm:$0xff]
      %v1156 = vld [vmem:[%s138 + $0xa1] sm:$0xff]
      %v1157 = vld [vmem:[%s138 + $0xa9] sm:$0xff]
      %v1158 = vld [vmem:[%s138 + $0xb1] sm:$0xff]
      %v1159 = vld [vmem:[%s138 + $0xb9] sm:$0xff]
      %v1160 = vld [vmem:[%s138 + $0xc1] sm:$0xff]
      %v1161 = vld [vmem:[%s138 + $0xc9] sm:$0xff]
      %v1162 = vld [vmem:[%s138 + $0xd1] sm:$0xff]
      %v1163 = vld [vmem:[%s138 + $0xd9] sm:$0xff]
      %v1164 = vld [vmem:[%s138 + $0xe1] sm:$0xff]
      %v1165 = vld [vmem:[%s138 + $0xe9] sm:$0xff]
      %v1166 = vpack.c.bf16 %v1139, %v1138
      %v1167 = vpack.c.bf16 %v1141, %v1140
      %v1168 = vpack.c.bf16 %v1143, %v1142
      %v1169 = vpack.c.bf16 %v1145, %v1144
      %v1170 = vpack.c.bf16 %v1147, %v1146
      %v1171 = vpack.c.bf16 %v1149, %v1148
      %v1172 = vpack.c.bf16 %v1151, %v1150
      %v1173 = vpack.c.bf16 %v1153, %v1152
      %v1174 = vpack.c.bf16 %v1155, %v1154
      %v1175 = vpack.c.bf16 %v1157, %v1156
      %v1176 = vpack.c.bf16 %v1159, %v1158
      %v1177 = vpack.c.bf16 %v1161, %v1160
      %v1178 = vpack.c.bf16 %v1163, %v1162
      %v1179 = vpack.c.bf16 %v1165, %v1164
      %s1180 = scalar_lea.vmem %s1, 16
      %v1181 = vld [vmem:[%s1180] sm:$0xf]
      %v1183 = vsel %vm232, %v1166, 0
      %v1186 = vsel %vm232, %v1167, 0
      %v1189 = vsel %vm232, %v1168, 0
      %v1192 = vsel %vm232, %v1169, 0
      %v1195 = vsel %vm232, %v1170, 0
      %v1198 = vsel %vm232, %v1171, 0
      %v1201 = vsel %vm232, %v1172, 0
      %v1204 = vsel %vm232, %v1173, 0
      %v1207 = vsel %vm232, %v1174, 0
      %v1210 = vsel %vm232, %v1175, 0
      %v1213 = vsel %vm232, %v1176, 0
      %v1216 = vsel %vm232, %v1177, 0
      %v1219 = vsel %vm232, %v1178, 0
      %v1222 = vsel %vm232, %v1179, 0
      %v1225 = vsel %vm275, %v1181, 0
      %1227 = vmatprep.subr.bf16.mxu0 0
      %1228 = vmatpush1.bf16.msra.mxu0 %v1225
      %1229 = vmatprep.subr.bf16.mxu0 0
      %1230 = vmatpush1.bf16.msra.mxu0 0
      %1231 = vmatprep.subr.bf16.mxu0 0
      %1232 = vmatpush1.bf16.msra.mxu0 0
      %1233 = vmatprep.subr.bf16.mxu0 0
      %1234 = vmatpush1.bf16.msra.mxu0 0
      %1235 = vmatprep.subr.bf16.mxu0 0
      %1236 = vmatpush1.bf16.msra.mxu0 0
      %1237 = vmatprep.subr.bf16.mxu0 0
      %1238 = vmatpush1.bf16.msra.mxu0 0
      %1239 = vmatprep.subr.bf16.mxu0 0
      %1240 = vmatpush1.bf16.msra.mxu0 0
      %1241 = vmatprep.subr.bf16.mxu0 0
      %1242 = vmatpush1.bf16.msra.mxu0 0
      %1243 = vmatprep.subr.bf16.mxu0 0
      %1244 = vmatpush1.bf16.msra.mxu0 0
      %1245 = vmatprep.subr.bf16.mxu0 0
      %1246 = vmatpush1.bf16.msra.mxu0 0
      %1247 = vmatprep.subr.bf16.mxu0 0
      %1248 = vmatpush1.bf16.msra.mxu0 0
      %1249 = vmatprep.subr.bf16.mxu0 0
      %1250 = vmatpush1.bf16.msra.mxu0 0
      %1251 = vmatprep.subr.bf16.mxu0 0
      %1252 = vmatpush1.bf16.msra.mxu0 0
      %1253 = vmatprep.subr.bf16.mxu0 0
      %1254 = vmatpush1.bf16.msra.mxu0 0
      %1255 = vmatprep.subr.bf16.mxu0 0
      %1256 = vmatpush1.bf16.msra.mxu0 0
      %1257 = vmatprep.subr.bf16.mxu0 0
      %1258 = vmatpush1.bf16.msra.mxu0 0
      %1259 = vmatprep.mubr.bf16.mxu0 0
      %1260 = vmatmul.mubr.bf16.gmra.mrb[0].mxu0 %v1183
      %v1261 = vpop.f32.mrb[0].mxu0
      %v1262 = vadd.f32 0.0, %v1261
      %v1263 = vpop.f32.mrb[0].mxu0
      %v1264 = vpop.f32.mrb[0].mxu0
      %v1265 = vadd.f32 0.0, %v1264
      %v1266 = vpop.f32.mrb[0].mxu0
      %1267 = vmatprep.mubr.bf16.mxu0 0
      %1268 = vmatmul.mubr.bf16.gmra.mrb[0].mxu0 %v1186
      %v1269 = vpop.f32.mrb[0].mxu0
      %v1270 = vadd.f32 0.0, %v1269
      %v1271 = vpop.f32.mrb[0].mxu0
      %v1272 = vpop.f32.mrb[0].mxu0
      %v1273 = vadd.f32 0.0, %v1272
      %v1274 = vpop.f32.mrb[0].mxu0
      %1275 = vmatprep.mubr.bf16.mxu0 0
      %1276 = vmatmul.mubr.bf16.gmra.mrb[0].mxu0 %v1189
      %v1277 = vpop.f32.mrb[0].mxu0
      %v1278 = vadd.f32 0.0, %v1277
      %v1279 = vpop.f32.mrb[0].mxu0
      %v1280 = vpop.f32.mrb[0].mxu0
      %v1281 = vadd.f32 0.0, %v1280
      %v1282 = vpop.f32.mrb[0].mxu0
      %1283 = vmatprep.mubr.bf16.mxu0 0
      %1284 = vmatmul.mubr.bf16.gmra.mrb[0].mxu0 %v1192
      %v1285 = vpop.f32.mrb[0].mxu0
      %v1286 = vadd.f32 0.0, %v1285
      %v1287 = vpop.f32.mrb[0].mxu0
      %v1288 = vpop.f32.mrb[0].mxu0
      %v1289 = vadd.f32 0.0, %v1288
      %v1290 = vpop.f32.mrb[0].mxu0
      %1291 = vmatprep.mubr.bf16.mxu0 0
      %1292 = vmatmul.mubr.bf16.gmra.mrb[0].mxu0 %v1195
      %v1293 = vpop.f32.mrb[0].mxu0
      %v1294 = vadd.f32 0.0, %v1293
      %v1295 = vpop.f32.mrb[0].mxu0
      %v1296 = vpop.f32.mrb[0].mxu0
      %v1297 = vadd.f32 0.0, %v1296
      %v1298 = vpop.f32.mrb[0].mxu0
      %1299 = vmatprep.mubr.bf16.mxu0 0
      %1300 = vmatmul.mubr.bf16.gmra.mrb[0].mxu0 %v1198
      %v1301 = vpop.f32.mrb[0].mxu0
      %v1302 = vadd.f32 0.0, %v1301
      %v1303 = vpop.f32.mrb[0].mxu0
      %v1304 = vpop.f32.mrb[0].mxu0
      %v1305 = vadd.f32 0.0, %v1304
      %v1306 = vpop.f32.mrb[0].mxu0
      %1307 = vmatprep.mubr.bf16.mxu0 0
      %1308 = vmatmul.mubr.bf16.gmra.mrb[0].mxu0 %v1201
      %v1309 = vpop.f32.mrb[0].mxu0
      %v1310 = vadd.f32 0.0, %v1309
      %v1311 = vpop.f32.mrb[0].mxu0
      %v1312 = vpop.f32.mrb[0].mxu0
      %v1313 = vadd.f32 0.0, %v1312
      %v1314 = vpop.f32.mrb[0].mxu0
      %1315 = vmatprep.mubr.bf16.mxu0 0
      %1316 = vmatmul.mubr.bf16.gmra.mrb[0].mxu0 %v1204
      %v1317 = vpop.f32.mrb[0].mxu0
      %v1318 = vadd.f32 0.0, %v1317
      %v1319 = vpop.f32.mrb[0].mxu0
      %v1320 = vpop.f32.mrb[0].mxu0
      %v1321 = vadd.f32 0.0, %v1320
      %v1322 = vpop.f32.mrb[0].mxu0
      %1323 = vmatprep.mubr.bf16.mxu0 0
      %1324 = vmatmul.mubr.bf16.gmra.mrb[0].mxu0 %v1207
      %v1325 = vpop.f32.mrb[0].mxu0
      %v1326 = vadd.f32 0.0, %v1325
      %v1327 = vpop.f32.mrb[0].mxu0
      %v1328 = vpop.f32.mrb[0].mxu0
      %v1329 = vadd.f32 0.0, %v1328
      %v1330 = vpop.f32.mrb[0].mxu0
      %1331 = vmatprep.mubr.bf16.mxu0 0
      %1332 = vmatmul.mubr.bf16.gmra.mrb[0].mxu0 %v1210
      %v1333 = vpop.f32.mrb[0].mxu0
      %v1334 = vadd.f32 0.0, %v1333
      %v1335 = vpop.f32.mrb[0].mxu0
      %v1336 = vpop.f32.mrb[0].mxu0
      %v1337 = vadd.f32 0.0, %v1336
      %v1338 = vpop.f32.mrb[0].mxu0
      %1339 = vmatprep.mubr.bf16.mxu0 0
      %1340 = vmatmul.mubr.bf16.gmra.mrb[0].mxu0 %v1213
      %v1341 = vpop.f32.mrb[0].mxu0
      %v1342 = vadd.f32 0.0, %v1341
      %v1343 = vpop.f32.mrb[0].mxu0
      %v1344 = vpop.f32.mrb[0].mxu0
      %v1345 = vadd.f32 0.0, %v1344
      %v1346 = vpop.f32.mrb[0].mxu0
      %1347 = vmatprep.mubr.bf16.mxu0 0
      %1348 = vmatmul.mubr.bf16.gmra.mrb[0].mxu0 %v1216
      %v1349 = vpop.f32.mrb[0].mxu0
      %v1350 = vadd.f32 0.0, %v1349
      %v1351 = vpop.f32.mrb[0].mxu0
      %v1352 = vpop.f32.mrb[0].mxu0
      %v1353 = vadd.f32 0.0, %v1352
      %v1354 = vpop.f32.mrb[0].mxu0
      %1355 = vmatprep.mubr.bf16.mxu0 0
      %1356 = vmatmul.mubr.bf16.gmra.mrb[0].mxu0 %v1219
      %v1357 = vpop.f32.mrb[0].mxu0
      %v1358 = vadd.f32 0.0, %v1357
      %v1359 = vpop.f32.mrb[0].mxu0
      %v1360 = vpop.f32.mrb[0].mxu0
      %v1361 = vadd.f32 0.0, %v1360
      %v1362 = vpop.f32.mrb[0].mxu0
      %1363 = vmatprep.mubr.bf16.mxu0 0
      %1364 = vmatmul.mubr.bf16.gmra.mrb[0].mxu0 %v1222
      %v1365 = vpop.f32.mrb[0].mxu0
      %v1366 = vadd.f32 0.0, %v1365
      %v1367 = vpop.f32.mrb[0].mxu0
      %v1368 = vpop.f32.mrb[0].mxu0
      %v1369 = vadd.f32 0.0, %v1368
      %v1370 = vpop.f32.mrb[0].mxu0
      %1371 = vdwg.mxu0
      %v1372 = vadd.f32 %v1110, %v1262
      %v1373 = vadd.f32 %v1111, %v1265
      %v1374 = vadd.f32 %v1112, %v1270
      %v1375 = vadd.f32 %v1113, %v1273
      %v1376 = vadd.f32 %v1114, %v1278
      %v1377 = vadd.f32 %v1115, %v1281
      %v1378 = vadd.f32 %v1116, %v1286
      %v1379 = vadd.f32 %v1117, %v1289
      %v1380 = vadd.f32 %v1118, %v1294
      %v1381 = vadd.f32 %v1119, %v1297
      %v1382 = vadd.f32 %v1120, %v1302
      %v1383 = vadd.f32 %v1121, %v1305
      %v1384 = vadd.f32 %v1122, %v1310
      %v1385 = vadd.f32 %v1123, %v1313
      %v1386 = vadd.f32 %v1124, %v1318
      %v1387 = vadd.f32 %v1125, %v1321
      %v1388 = vadd.f32 %v1126, %v1326
      %v1389 = vadd.f32 %v1127, %v1329
      %v1390 = vadd.f32 %v1128, %v1334
      %v1391 = vadd.f32 %v1129, %v1337
      %v1392 = vadd.f32 %v1130, %v1342
      %v1393 = vadd.f32 %v1131, %v1345
      %v1394 = vadd.f32 %v1132, %v1350
      %v1395 = vadd.f32 %v1133, %v1353
      %v1396 = vadd.f32 %v1134, %v1358
      %v1397 = vadd.f32 %v1135, %v1361
      %v1398 = vadd.f32 %v1136, %v1366
      %v1399 = vadd.f32 %v1137, %v1369
      %v1400 = vld [vmem:[%s138 + $0x12] sm:$0xff]
      %v1401 = vld [vmem:[%s138 + $0x1a] sm:$0xff]
      %v1402 = vld [vmem:[%s138 + $0x22] sm:$0xff]
      %v1403 = vld [vmem:[%s138 + $0x2a] sm:$0xff]
      %v1404 = vld [vmem:[%s138 + $0x32] sm:$0xff]
      %v1405 = vld [vmem:[%s138 + $0x3a] sm:$0xff]
      %v1406 = vld [vmem:[%s138 + $0x42] sm:$0xff]
      %v1407 = vld [vmem:[%s138 + $0x4a] sm:$0xff]
      %v1408 = vld [vmem:[%s138 + $0x52] sm:$0xff]
      %v1409 = vld [vmem:[%s138 + $0x5a] sm:$0xff]
      %v1410 = vld [vmem:[%s138 + $0x62] sm:$0xff]
      %v1411 = vld [vmem:[%s138 + $0x6a] sm:$0xff]
      %v1412 = vld [vmem:[%s138 + $0x72] sm:$0xff]
      %v1413 = vld [vmem:[%s138 + $0x7a] sm:$0xff]
      %v1414 = vld [vmem:[%s138 + $0x82] sm:$0xff]
      %v1415 = vld [vmem:[%s138 + $0x8a] sm:$0xff]
      %v1416 = vld [vmem:[%s138 + $0x92] sm:$0xff]
      %v1417 = vld [vmem:[%s138 + $0x9a] sm:$0xff]
      %v1418 = vld [vmem:[%s138 + $0xa2] sm:$0xff]
      %v1419 = vld [vmem:[%s138 + $0xaa] sm:$0xff]
      %v1420 = vld [vmem:[%s138 + $0xb2] sm:$0xff]
      %v1421 = vld [vmem:[%s138 + $0xba] sm:$0xff]
      %v1422 = vld [vmem:[%s138 + $0xc2] sm:$0xff]
      %v1423 = vld [vmem:[%s138 + $0xca] sm:$0xff]
      %v1424 = vld [vmem:[%s138 + $0xd2] sm:$0xff]
      %v1425 = vld [vmem:[%s138 + $0xda] sm:$0xff]
      %v1426 = vld [vmem:[%s138 + $0xe2] sm:$0xff]
      %v1427 = vld [vmem:[%s138 + $0xea] sm:$0xff]
      %v1428 = vpack.c.bf16 %v1401, %v1400
      %v1429 = vpack.c.bf16 %v1403, %v1402
      %v1430 = vpack.c.bf16 %v1405, %v1404
      %v1431 = vpack.c.bf16 %v1407, %v1406
      %v1432 = vpack.c.bf16 %v1409, %v1408
      %v1433 = vpack.c.bf16 %v1411, %v1410
      %v1434 = vpack.c.bf16 %v1413, %v1412
      %v1435 = vpack.c.bf16 %v1415, %v1414
      %v1436 = vpack.c.bf16 %v1417, %v1416
      %v1437 = vpack.c.bf16 %v1419, %v1418
      %v1438 = vpack.c.bf16 %v1421, %v1420
      %v1439 = vpack.c.bf16 %v1423, %v1422
      %v1440 = vpack.c.bf16 %v1425, %v1424
      %v1441 = vpack.c.bf16 %v1427, %v1426
      %s1442 = scalar_lea.vmem %s1, 20
      %v1443 = vld [vmem:[%s1442] sm:$0xf]
      %v1445 = vsel %vm232, %v1428, 0
      %v1448 = vsel %vm232, %v1429, 0
      %v1451 = vsel %vm232, %v1430, 0
      %v1454 = vsel %vm232, %v1431, 0
      %v1457 = vsel %vm232, %v1432, 0
      %v1460 = vsel %vm232, %v1433, 0
      %v1463 = vsel %vm232, %v1434, 0
      %v1466 = vsel %vm232, %v1435, 0
      %v1469 = vsel %vm232, %v1436, 0
      %v1472 = vsel %vm232, %v1437, 0
      %v1475 = vsel %vm232, %v1438, 0
      %v1478 = vsel %vm232, %v1439, 0
      %v1481 = vsel %vm232, %v1440, 0
      %v1484 = vsel %vm232, %v1441, 0
      %v1487 = vsel %vm275, %v1443, 0
      %1489 = vmatprep.subr.bf16.mxu0 0
      %1490 = vmatpush1.bf16.msra.mxu0 %v1487
      %1491 = vmatprep.subr.bf16.mxu0 0
      %1492 = vmatpush1.bf16.msra.mxu0 0
      %1493 = vmatprep.subr.bf16.mxu0 0
      %1494 = vmatpush1.bf16.msra.mxu0 0
      %1495 = vmatprep.subr.bf16.mxu0 0
      %1496 = vmatpush1.bf16.msra.mxu0 0
      %1497 = vmatprep.subr.bf16.mxu0 0
      %1498 = vmatpush1.bf16.msra.mxu0 0
      %1499 = vmatprep.subr.bf16.mxu0 0
      %1500 = vmatpush1.bf16.msra.mxu0 0
      %1501 = vmatprep.subr.bf16.mxu0 0
      %1502 = vmatpush1.bf16.msra.mxu0 0
      %1503 = vmatprep.subr.bf16.mxu0 0
      %1504 = vmatpush1.bf16.msra.mxu0 0
      %1505 = vmatprep.subr.bf16.mxu0 0
      %1506 = vmatpush1.bf16.msra.mxu0 0
      %1507 = vmatprep.subr.bf16.mxu0 0
      %1508 = vmatpush1.bf16.msra.mxu0 0
      %1509 = vmatprep.subr.bf16.mxu0 0
      %1510 = vmatpush1.bf16.msra.mxu0 0
      %1511 = vmatprep.subr.bf16.mxu0 0
      %1512 = vmatpush1.bf16.msra.mxu0 0
      %1513 = vmatprep.subr.bf16.mxu0 0
      %1514 = vmatpush1.bf16.msra.mxu0 0
      %1515 = vmatprep.subr.bf16.mxu0 0
      %1516 = vmatpush1.bf16.msra.mxu0 0
      %1517 = vmatprep.subr.bf16.mxu0 0
      %1518 = vmatpush1.bf16.msra.mxu0 0
      %1519 = vmatprep.subr.bf16.mxu0 0
      %1520 = vmatpush1.bf16.msra.mxu0 0
      %1521 = vmatprep.mubr.bf16.mxu0 0
      %1522 = vmatmul.mubr.bf16.gmra.mrb[0].mxu0 %v1445
      %v1523 = vpop.f32.mrb[0].mxu0
      %v1524 = vadd.f32 0.0, %v1523
      %v1525 = vpop.f32.mrb[0].mxu0
      %v1526 = vpop.f32.mrb[0].mxu0
      %v1527 = vadd.f32 0.0, %v1526
      %v1528 = vpop.f32.mrb[0].mxu0
      %1529 = vmatprep.mubr.bf16.mxu0 0
      %1530 = vmatmul.mubr.bf16.gmra.mrb[0].mxu0 %v1448
      %v1531 = vpop.f32.mrb[0].mxu0
      %v1532 = vadd.f32 0.0, %v1531
      %v1533 = vpop.f32.mrb[0].mxu0
      %v1534 = vpop.f32.mrb[0].mxu0
      %v1535 = vadd.f32 0.0, %v1534
      %v1536 = vpop.f32.mrb[0].mxu0
      %1537 = vmatprep.mubr.bf16.mxu0 0
      %1538 = vmatmul.mubr.bf16.gmra.mrb[0].mxu0 %v1451
      %v1539 = vpop.f32.mrb[0].mxu0
      %v1540 = vadd.f32 0.0, %v1539
      %v1541 = vpop.f32.mrb[0].mxu0
      %v1542 = vpop.f32.mrb[0].mxu0
      %v1543 = vadd.f32 0.0, %v1542
      %v1544 = vpop.f32.mrb[0].mxu0
      %1545 = vmatprep.mubr.bf16.mxu0 0
      %1546 = vmatmul.mubr.bf16.gmra.mrb[0].mxu0 %v1454
      %v1547 = vpop.f32.mrb[0].mxu0
      %v1548 = vadd.f32 0.0, %v1547
      %v1549 = vpop.f32.mrb[0].mxu0
      %v1550 = vpop.f32.mrb[0].mxu0
      %v1551 = vadd.f32 0.0, %v1550
      %v1552 = vpop.f32.mrb[0].mxu0
      %1553 = vmatprep.mubr.bf16.mxu0 0
      %1554 = vmatmul.mubr.bf16.gmra.mrb[0].mxu0 %v1457
      %v1555 = vpop.f32.mrb[0].mxu0
      %v1556 = vadd.f32 0.0, %v1555
      %v1557 = vpop.f32.mrb[0].mxu0
      %v1558 = vpop.f32.mrb[0].mxu0
      %v1559 = vadd.f32 0.0, %v1558
      %v1560 = vpop.f32.mrb[0].mxu0
      %1561 = vmatprep.mubr.bf16.mxu0 0
      %1562 = vmatmul.mubr.bf16.gmra.mrb[0].mxu0 %v1460
      %v1563 = vpop.f32.mrb[0].mxu0
      %v1564 = vadd.f32 0.0, %v1563
      %v1565 = vpop.f32.mrb[0].mxu0
      %v1566 = vpop.f32.mrb[0].mxu0
      %v1567 = vadd.f32 0.0, %v1566
      %v1568 = vpop.f32.mrb[0].mxu0
      %1569 = vmatprep.mubr.bf16.mxu0 0
      %1570 = vmatmul.mubr.bf16.gmra.mrb[0].mxu0 %v1463
      %v1571 = vpop.f32.mrb[0].mxu0
      %v1572 = vadd.f32 0.0, %v1571
      %v1573 = vpop.f32.mrb[0].mxu0
      %v1574 = vpop.f32.mrb[0].mxu0
      %v1575 = vadd.f32 0.0, %v1574
      %v1576 = vpop.f32.mrb[0].mxu0
      %1577 = vmatprep.mubr.bf16.mxu0 0
      %1578 = vmatmul.mubr.bf16.gmra.mrb[0].mxu0 %v1466
      %v1579 = vpop.f32.mrb[0].mxu0
      %v1580 = vadd.f32 0.0, %v1579
      %v1581 = vpop.f32.mrb[0].mxu0
      %v1582 = vpop.f32.mrb[0].mxu0
      %v1583 = vadd.f32 0.0, %v1582
      %v1584 = vpop.f32.mrb[0].mxu0
      %1585 = vmatprep.mubr.bf16.mxu0 0
      %1586 = vmatmul.mubr.bf16.gmra.mrb[0].mxu0 %v1469
      %v1587 = vpop.f32.mrb[0].mxu0
      %v1588 = vadd.f32 0.0, %v1587
      %v1589 = vpop.f32.mrb[0].mxu0
      %v1590 = vpop.f32.mrb[0].mxu0
      %v1591 = vadd.f32 0.0, %v1590
      %v1592 = vpop.f32.mrb[0].mxu0
      %1593 = vmatprep.mubr.bf16.mxu0 0
      %1594 = vmatmul.mubr.bf16.gmra.mrb[0].mxu0 %v1472
      %v1595 = vpop.f32.mrb[0].mxu0
      %v1596 = vadd.f32 0.0, %v1595
      %v1597 = vpop.f32.mrb[0].mxu0
      %v1598 = vpop.f32.mrb[0].mxu0
      %v1599 = vadd.f32 0.0, %v1598
      %v1600 = vpop.f32.mrb[0].mxu0
      %1601 = vmatprep.mubr.bf16.mxu0 0
      %1602 = vmatmul.mubr.bf16.gmra.mrb[0].mxu0 %v1475
      %v1603 = vpop.f32.mrb[0].mxu0
      %v1604 = vadd.f32 0.0, %v1603
      %v1605 = vpop.f32.mrb[0].mxu0
      %v1606 = vpop.f32.mrb[0].mxu0
      %v1607 = vadd.f32 0.0, %v1606
      %v1608 = vpop.f32.mrb[0].mxu0
      %1609 = vmatprep.mubr.bf16.mxu0 0
      %1610 = vmatmul.mubr.bf16.gmra.mrb[0].mxu0 %v1478
      %v1611 = vpop.f32.mrb[0].mxu0
      %v1612 = vadd.f32 0.0, %v1611
      %v1613 = vpop.f32.mrb[0].mxu0
      %v1614 = vpop.f32.mrb[0].mxu0
      %v1615 = vadd.f32 0.0, %v1614
      %v1616 = vpop.f32.mrb[0].mxu0
      %1617 = vmatprep.mubr.bf16.mxu0 0
      %1618 = vmatmul.mubr.bf16.gmra.mrb[0].mxu0 %v1481
      %v1619 = vpop.f32.mrb[0].mxu0
      %v1620 = vadd.f32 0.0, %v1619
      %v1621 = vpop.f32.mrb[0].mxu0
      %v1622 = vpop.f32.mrb[0].mxu0
      %v1623 = vadd.f32 0.0, %v1622
      %v1624 = vpop.f32.mrb[0].mxu0
      %1625 = vmatprep.mubr.bf16.mxu0 0
      %1626 = vmatmul.mubr.bf16.gmra.mrb[0].mxu0 %v1484
      %v1627 = vpop.f32.mrb[0].mxu0
      %v1628 = vadd.f32 0.0, %v1627
      %v1629 = vpop.f32.mrb[0].mxu0
      %v1630 = vpop.f32.mrb[0].mxu0
      %v1631 = vadd.f32 0.0, %v1630
      %v1632 = vpop.f32.mrb[0].mxu0
      %1633 = vdwg.mxu0
      %v1634 = vadd.f32 %v1372, %v1524
      %v1635 = vadd.f32 %v1373, %v1527
      %v1636 = vadd.f32 %v1374, %v1532
      %v1637 = vadd.f32 %v1375, %v1535
      %v1638 = vadd.f32 %v1376, %v1540
      %v1639 = vadd.f32 %v1377, %v1543
      %v1640 = vadd.f32 %v1378, %v1548
      %v1641 = vadd.f32 %v1379, %v1551
      %v1642 = vadd.f32 %v1380, %v1556
      %v1643 = vadd.f32 %v1381, %v1559
      %v1644 = vadd.f32 %v1382, %v1564
      %v1645 = vadd.f32 %v1383, %v1567
      %v1646 = vadd.f32 %v1384, %v1572
      %v1647 = vadd.f32 %v1385, %v1575
      %v1648 = vadd.f32 %v1386, %v1580
      %v1649 = vadd.f32 %v1387, %v1583
      %v1650 = vadd.f32 %v1388, %v1588
      %v1651 = vadd.f32 %v1389, %v1591
      %v1652 = vadd.f32 %v1390, %v1596
      %v1653 = vadd.f32 %v1391, %v1599
      %v1654 = vadd.f32 %v1392, %v1604
      %v1655 = vadd.f32 %v1393, %v1607
      %v1656 = vadd.f32 %v1394, %v1612
      %v1657 = vadd.f32 %v1395, %v1615
      %v1658 = vadd.f32 %v1396, %v1620
      %v1659 = vadd.f32 %v1397, %v1623
      %v1660 = vadd.f32 %v1398, %v1628
      %v1661 = vadd.f32 %v1399, %v1631
      %v1662 = vld [vmem:[%s138 + $0x20] sm:$0xff]
      %v1663 = vld [vmem:[%s138 + $0x28] sm:$0xff]
      %v1664 = vld [vmem:[%s138 + $0x30] sm:$0xff]
      %v1665 = vld [vmem:[%s138 + $0x38] sm:$0xff]
      %v1666 = vld [vmem:[%s138 + $0x40] sm:$0xff]
      %v1667 = vld [vmem:[%s138 + $0x48] sm:$0xff]
      %v1668 = vld [vmem:[%s138 + $0x50] sm:$0xff]
      %v1669 = vld [vmem:[%s138 + $0x58] sm:$0xff]
      %v1670 = vld [vmem:[%s138 + $0x60] sm:$0xff]
      %v1671 = vld [vmem:[%s138 + $0x68] sm:$0xff]
      %v1672 = vld [vmem:[%s138 + $0x70] sm:$0xff]
      %v1673 = vld [vmem:[%s138 + $0x78] sm:$0xff]
      %v1674 = vld [vmem:[%s138 + $0x80] sm:$0xff]
      %v1675 = vld [vmem:[%s138 + $0x88] sm:$0xff]
      %v1676 = vld [vmem:[%s138 + $0x90] sm:$0xff]
      %v1677 = vld [vmem:[%s138 + $0x98] sm:$0xff]
      %v1678 = vld [vmem:[%s138 + $0xa0] sm:$0xff]
      %v1679 = vld [vmem:[%s138 + $0xa8] sm:$0xff]
      %v1680 = vld [vmem:[%s138 + $0xb0] sm:$0xff]
      %v1681 = vld [vmem:[%s138 + $0xb8] sm:$0xff]
      %v1682 = vld [vmem:[%s138 + $0xc0] sm:$0xff]
      %v1683 = vld [vmem:[%s138 + $0xc8] sm:$0xff]
      %v1684 = vld [vmem:[%s138 + $0xd0] sm:$0xff]
      %v1685 = vld [vmem:[%s138 + $0xd8] sm:$0xff]
      %v1686 = vld [vmem:[%s138 + $0xe0] sm:$0xff]
      %v1687 = vld [vmem:[%s138 + $0xe8] sm:$0xff]
      %v1688 = vld [vmem:[%s138 + $0xf0] sm:$0xff]
      %v1689 = vld [vmem:[%s138 + $0xf8] sm:$0xff]
      %v1690 = vpack.c.bf16 %v1663, %v1662
      %v1691 = vpack.c.bf16 %v1665, %v1664
      %v1692 = vpack.c.bf16 %v1667, %v1666
      %v1693 = vpack.c.bf16 %v1669, %v1668
      %v1694 = vpack.c.bf16 %v1671, %v1670
      %v1695 = vpack.c.bf16 %v1673, %v1672
      %v1696 = vpack.c.bf16 %v1675, %v1674
      %v1697 = vpack.c.bf16 %v1677, %v1676
      %v1698 = vpack.c.bf16 %v1679, %v1678
      %v1699 = vpack.c.bf16 %v1681, %v1680
      %v1700 = vpack.c.bf16 %v1683, %v1682
      %v1701 = vpack.c.bf16 %v1685, %v1684
      %v1702 = vpack.c.bf16 %v1687, %v1686
      %v1703 = vpack.c.bf16 %v1689, %v1688
      %s1704 = scalar_lea.vmem %s1, 24
      %v1705 = vld [vmem:[%s1704] sm:$0xf]
      %v1707 = vsel %vm232, %v1690, 0
      %v1710 = vsel %vm232, %v1691, 0
      %v1713 = vsel %vm232, %v1692, 0
      %v1716 = vsel %vm232, %v1693, 0
      %v1719 = vsel %vm232, %v1694, 0
      %v1722 = vsel %vm232, %v1695, 0
      %v1725 = vsel %vm232, %v1696, 0
      %v1728 = vsel %vm232, %v1697, 0
      %v1731 = vsel %vm232, %v1698, 0
      %v1734 = vsel %vm232, %v1699, 0
      %v1737 = vsel %vm232, %v1700, 0
      %v1740 = vsel %vm232, %v1701, 0
      %v1743 = vsel %vm232, %v1702, 0
      %v1746 = vsel %vm232, %v1703, 0
      %v1749 = vsel %vm275, %v1705, 0
      %1751 = vmatprep.subr.bf16.mxu0 0
      %1752 = vmatpush1.bf16.msra.mxu0 %v1749
      %1753 = vmatprep.subr.bf16.mxu0 0
      %1754 = vmatpush1.bf16.msra.mxu0 0
      %1755 = vmatprep.subr.bf16.mxu0 0
      %1756 = vmatpush1.bf16.msra.mxu0 0
      %1757 = vmatprep.subr.bf16.mxu0 0
      %1758 = vmatpush1.bf16.msra.mxu0 0
      %1759 = vmatprep.subr.bf16.mxu0 0
      %1760 = vmatpush1.bf16.msra.mxu0 0
      %1761 = vmatprep.subr.bf16.mxu0 0
      %1762 = vmatpush1.bf16.msra.mxu0 0
      %1763 = vmatprep.subr.bf16.mxu0 0
      %1764 = vmatpush1.bf16.msra.mxu0 0
      %1765 = vmatprep.subr.bf16.mxu0 0
      %1766 = vmatpush1.bf16.msra.mxu0 0
      %1767 = vmatprep.subr.bf16.mxu0 0
      %1768 = vmatpush1.bf16.msra.mxu0 0
      %1769 = vmatprep.subr.bf16.mxu0 0
      %1770 = vmatpush1.bf16.msra.mxu0 0
      %1771 = vmatprep.subr.bf16.mxu0 0
      %1772 = vmatpush1.bf16.msra.mxu0 0
      %1773 = vmatprep.subr.bf16.mxu0 0
      %1774 = vmatpush1.bf16.msra.mxu0 0
      %1775 = vmatprep.subr.bf16.mxu0 0
      %1776 = vmatpush1.bf16.msra.mxu0 0
      %1777 = vmatprep.subr.bf16.mxu0 0
      %1778 = vmatpush1.bf16.msra.mxu0 0
      %1779 = vmatprep.subr.bf16.mxu0 0
      %1780 = vmatpush1.bf16.msra.mxu0 0
      %1781 = vmatprep.subr.bf16.mxu0 0
      %1782 = vmatpush1.bf16.msra.mxu0 0
      %1783 = vmatprep.mubr.bf16.mxu0 0
      %1784 = vmatmul.mubr.bf16.gmra.mrb[0].mxu0 %v1707
      %v1785 = vpop.f32.mrb[0].mxu0
      %v1786 = vadd.f32 0.0, %v1785
      %v1787 = vpop.f32.mrb[0].mxu0
      %v1788 = vpop.f32.mrb[0].mxu0
      %v1789 = vadd.f32 0.0, %v1788
      %v1790 = vpop.f32.mrb[0].mxu0
      %1791 = vmatprep.mubr.bf16.mxu0 0
      %1792 = vmatmul.mubr.bf16.gmra.mrb[0].mxu0 %v1710
      %v1793 = vpop.f32.mrb[0].mxu0
      %v1794 = vadd.f32 0.0, %v1793
      %v1795 = vpop.f32.mrb[0].mxu0
      %v1796 = vpop.f32.mrb[0].mxu0
      %v1797 = vadd.f32 0.0, %v1796
      %v1798 = vpop.f32.mrb[0].mxu0
      %1799 = vmatprep.mubr.bf16.mxu0 0
      %1800 = vmatmul.mubr.bf16.gmra.mrb[0].mxu0 %v1713
      %v1801 = vpop.f32.mrb[0].mxu0
      %v1802 = vadd.f32 0.0, %v1801
      %v1803 = vpop.f32.mrb[0].mxu0
      %v1804 = vpop.f32.mrb[0].mxu0
      %v1805 = vadd.f32 0.0, %v1804
      %v1806 = vpop.f32.mrb[0].mxu0
      %1807 = vmatprep.mubr.bf16.mxu0 0
      %1808 = vmatmul.mubr.bf16.gmra.mrb[0].mxu0 %v1716
      %v1809 = vpop.f32.mrb[0].mxu0
      %v1810 = vadd.f32 0.0, %v1809
      %v1811 = vpop.f32.mrb[0].mxu0
      %v1812 = vpop.f32.mrb[0].mxu0
      %v1813 = vadd.f32 0.0, %v1812
      %v1814 = vpop.f32.mrb[0].mxu0
      %1815 = vmatprep.mubr.bf16.mxu0 0
      %1816 = vmatmul.mubr.bf16.gmra.mrb[0].mxu0 %v1719
      %v1817 = vpop.f32.mrb[0].mxu0
      %v1818 = vadd.f32 0.0, %v1817
      %v1819 = vpop.f32.mrb[0].mxu0
      %v1820 = vpop.f32.mrb[0].mxu0
      %v1821 = vadd.f32 0.0, %v1820
      %v1822 = vpop.f32.mrb[0].mxu0
      %1823 = vmatprep.mubr.bf16.mxu0 0
      %1824 = vmatmul.mubr.bf16.gmra.mrb[0].mxu0 %v1722
      %v1825 = vpop.f32.mrb[0].mxu0
      %v1826 = vadd.f32 0.0, %v1825
      %v1827 = vpop.f32.mrb[0].mxu0
      %v1828 = vpop.f32.mrb[0].mxu0
      %v1829 = vadd.f32 0.0, %v1828
      %v1830 = vpop.f32.mrb[0].mxu0
      %1831 = vmatprep.mubr.bf16.mxu0 0
      %1832 = vmatmul.mubr.bf16.gmra.mrb[0].mxu0 %v1725
      %v1833 = vpop.f32.mrb[0].mxu0
      %v1834 = vadd.f32 0.0, %v1833
      %v1835 = vpop.f32.mrb[0].mxu0
      %v1836 = vpop.f32.mrb[0].mxu0
      %v1837 = vadd.f32 0.0, %v1836
      %v1838 = vpop.f32.mrb[0].mxu0
      %1839 = vmatprep.mubr.bf16.mxu0 0
      %1840 = vmatmul.mubr.bf16.gmra.mrb[0].mxu0 %v1728
      %v1841 = vpop.f32.mrb[0].mxu0
      %v1842 = vadd.f32 0.0, %v1841
      %v1843 = vpop.f32.mrb[0].mxu0
      %v1844 = vpop.f32.mrb[0].mxu0
      %v1845 = vadd.f32 0.0, %v1844
      %v1846 = vpop.f32.mrb[0].mxu0
      %1847 = vmatprep.mubr.bf16.mxu0 0
      %1848 = vmatmul.mubr.bf16.gmra.mrb[0].mxu0 %v1731
      %v1849 = vpop.f32.mrb[0].mxu0
      %v1850 = vadd.f32 0.0, %v1849
      %v1851 = vpop.f32.mrb[0].mxu0
      %v1852 = vpop.f32.mrb[0].mxu0
      %v1853 = vadd.f32 0.0, %v1852
      %v1854 = vpop.f32.mrb[0].mxu0
      %1855 = vmatprep.mubr.bf16.mxu0 0
      %1856 = vmatmul.mubr.bf16.gmra.mrb[0].mxu0 %v1734
      %v1857 = vpop.f32.mrb[0].mxu0
      %v1858 = vadd.f32 0.0, %v1857
      %v1859 = vpop.f32.mrb[0].mxu0
      %v1860 = vpop.f32.mrb[0].mxu0
      %v1861 = vadd.f32 0.0, %v1860
      %v1862 = vpop.f32.mrb[0].mxu0
      %1863 = vmatprep.mubr.bf16.mxu0 0
      %1864 = vmatmul.mubr.bf16.gmra.mrb[0].mxu0 %v1737
      %v1865 = vpop.f32.mrb[0].mxu0
      %v1866 = vadd.f32 0.0, %v1865
      %v1867 = vpop.f32.mrb[0].mxu0
      %v1868 = vpop.f32.mrb[0].mxu0
      %v1869 = vadd.f32 0.0, %v1868
      %v1870 = vpop.f32.mrb[0].mxu0
      %1871 = vmatprep.mubr.bf16.mxu0 0
      %1872 = vmatmul.mubr.bf16.gmra.mrb[0].mxu0 %v1740
      %v1873 = vpop.f32.mrb[0].mxu0
      %v1874 = vadd.f32 0.0, %v1873
      %v1875 = vpop.f32.mrb[0].mxu0
      %v1876 = vpop.f32.mrb[0].mxu0
      %v1877 = vadd.f32 0.0, %v1876
      %v1878 = vpop.f32.mrb[0].mxu0
      %1879 = vmatprep.mubr.bf16.mxu0 0
      %1880 = vmatmul.mubr.bf16.gmra.mrb[0].mxu0 %v1743
      %v1881 = vpop.f32.mrb[0].mxu0
      %v1882 = vadd.f32 0.0, %v1881
      %v1883 = vpop.f32.mrb[0].mxu0
      %v1884 = vpop.f32.mrb[0].mxu0
      %v1885 = vadd.f32 0.0, %v1884
      %v1886 = vpop.f32.mrb[0].mxu0
      %1887 = vmatprep.mubr.bf16.mxu0 0
      %1888 = vmatmul.mubr.bf16.gmra.mrb[0].mxu0 %v1746
      %v1889 = vpop.f32.mrb[0].mxu0
      %v1890 = vadd.f32 0.0, %v1889
      %v1891 = vpop.f32.mrb[0].mxu0
      %v1892 = vpop.f32.mrb[0].mxu0
      %v1893 = vadd.f32 0.0, %v1892
      %v1894 = vpop.f32.mrb[0].mxu0
      %1895 = vdwg.mxu0
      %v1896 = vadd.f32 %v1634, %v1786
      %v1897 = vadd.f32 %v1635, %v1789
      %v1898 = vadd.f32 %v1636, %v1794
      %v1899 = vadd.f32 %v1637, %v1797
      %v1900 = vadd.f32 %v1638, %v1802
      %v1901 = vadd.f32 %v1639, %v1805
      %v1902 = vadd.f32 %v1640, %v1810
      %v1903 = vadd.f32 %v1641, %v1813
      %v1904 = vadd.f32 %v1642, %v1818
      %v1905 = vadd.f32 %v1643, %v1821
      %v1906 = vadd.f32 %v1644, %v1826
      %v1907 = vadd.f32 %v1645, %v1829
      %v1908 = vadd.f32 %v1646, %v1834
      %v1909 = vadd.f32 %v1647, %v1837
      %v1910 = vadd.f32 %v1648, %v1842
      %v1911 = vadd.f32 %v1649, %v1845
      %v1912 = vadd.f32 %v1650, %v1850
      %v1913 = vadd.f32 %v1651, %v1853
      %v1914 = vadd.f32 %v1652, %v1858
      %v1915 = vadd.f32 %v1653, %v1861
      %v1916 = vadd.f32 %v1654, %v1866
      %v1917 = vadd.f32 %v1655, %v1869
      %v1918 = vadd.f32 %v1656, %v1874
      %v1919 = vadd.f32 %v1657, %v1877
      %v1920 = vadd.f32 %v1658, %v1882
      %v1921 = vadd.f32 %v1659, %v1885
      %v1922 = vadd.f32 %v1660, %v1890
      %v1923 = vadd.f32 %v1661, %v1893
      %v1924 = vld [vmem:[%s138 + $0x21] sm:$0xff]
      %v1925 = vld [vmem:[%s138 + $0x29] sm:$0xff]
      %v1926 = vld [vmem:[%s138 + $0x31] sm:$0xff]
      %v1927 = vld [vmem:[%s138 + $0x39] sm:$0xff]
      %v1928 = vld [vmem:[%s138 + $0x41] sm:$0xff]
      %v1929 = vld [vmem:[%s138 + $0x49] sm:$0xff]
      %v1930 = vld [vmem:[%s138 + $0x51] sm:$0xff]
      %v1931 = vld [vmem:[%s138 + $0x59] sm:$0xff]
      %v1932 = vld [vmem:[%s138 + $0x61] sm:$0xff]
      %v1933 = vld [vmem:[%s138 + $0x69] sm:$0xff]
      %v1934 = vld [vmem:[%s138 + $0x71] sm:$0xff]
      %v1935 = vld [vmem:[%s138 + $0x79] sm:$0xff]
      %v1936 = vld [vmem:[%s138 + $0x81] sm:$0xff]
      %v1937 = vld [vmem:[%s138 + $0x89] sm:$0xff]
      %v1938 = vld [vmem:[%s138 + $0x91] sm:$0xff]
      %v1939 = vld [vmem:[%s138 + $0x99] sm:$0xff]
      %v1940 = vld [vmem:[%s138 + $0xa1] sm:$0xff]
      %v1941 = vld [vmem:[%s138 + $0xa9] sm:$0xff]
      %v1942 = vld [vmem:[%s138 + $0xb1] sm:$0xff]
      %v1943 = vld [vmem:[%s138 + $0xb9] sm:$0xff]
      %v1944 = vld [vmem:[%s138 + $0xc1] sm:$0xff]
      %v1945 = vld [vmem:[%s138 + $0xc9] sm:$0xff]
      %v1946 = vld [vmem:[%s138 + $0xd1] sm:$0xff]
      %v1947 = vld [vmem:[%s138 + $0xd9] sm:$0xff]
      %v1948 = vld [vmem:[%s138 + $0xe1] sm:$0xff]
      %v1949 = vld [vmem:[%s138 + $0xe9] sm:$0xff]
      %v1950 = vld [vmem:[%s138 + $0xf1] sm:$0xff]
      %v1951 = vld [vmem:[%s138 + $0xf9] sm:$0xff]
      %v1952 = vpack.c.bf16 %v1925, %v1924
      %v1953 = vpack.c.bf16 %v1927, %v1926
      %v1954 = vpack.c.bf16 %v1929, %v1928
      %v1955 = vpack.c.bf16 %v1931, %v1930
      %v1956 = vpack.c.bf16 %v1933, %v1932
      %v1957 = vpack.c.bf16 %v1935, %v1934
      %v1958 = vpack.c.bf16 %v1937, %v1936
      %v1959 = vpack.c.bf16 %v1939, %v1938
      %v1960 = vpack.c.bf16 %v1941, %v1940
      %v1961 = vpack.c.bf16 %v1943, %v1942
      %v1962 = vpack.c.bf16 %v1945, %v1944
      %v1963 = vpack.c.bf16 %v1947, %v1946
      %v1964 = vpack.c.bf16 %v1949, %v1948
      %v1965 = vpack.c.bf16 %v1951, %v1950
      %s1966 = scalar_lea.vmem %s1, 28
      %v1967 = vld [vmem:[%s1966] sm:$0xf]
      %v1969 = vsel %vm232, %v1952, 0
      %v1972 = vsel %vm232, %v1953, 0
      %v1975 = vsel %vm232, %v1954, 0
      %v1978 = vsel %vm232, %v1955, 0
      %v1981 = vsel %vm232, %v1956, 0
      %v1984 = vsel %vm232, %v1957, 0
      %v1987 = vsel %vm232, %v1958, 0
      %v1990 = vsel %vm232, %v1959, 0
      %v1993 = vsel %vm232, %v1960, 0
      %v1996 = vsel %vm232, %v1961, 0
      %v1999 = vsel %vm232, %v1962, 0
      %v2002 = vsel %vm232, %v1963, 0
      %v2005 = vsel %vm232, %v1964, 0
      %v2008 = vsel %vm232, %v1965, 0
      %v2011 = vsel %vm275, %v1967, 0
      %2013 = vmatprep.subr.bf16.mxu0 0
      %2014 = vmatpush1.bf16.msra.mxu0 %v2011
      %2015 = vmatprep.subr.bf16.mxu0 0
      %2016 = vmatpush1.bf16.msra.mxu0 0
      %2017 = vmatprep.subr.bf16.mxu0 0
      %2018 = vmatpush1.bf16.msra.mxu0 0
      %2019 = vmatprep.subr.bf16.mxu0 0
      %2020 = vmatpush1.bf16.msra.mxu0 0
      %2021 = vmatprep.subr.bf16.mxu0 0
      %2022 = vmatpush1.bf16.msra.mxu0 0
      %2023 = vmatprep.subr.bf16.mxu0 0
      %2024 = vmatpush1.bf16.msra.mxu0 0
      %2025 = vmatprep.subr.bf16.mxu0 0
      %2026 = vmatpush1.bf16.msra.mxu0 0
      %2027 = vmatprep.subr.bf16.mxu0 0
      %2028 = vmatpush1.bf16.msra.mxu0 0
      %2029 = vmatprep.subr.bf16.mxu0 0
      %2030 = vmatpush1.bf16.msra.mxu0 0
      %2031 = vmatprep.subr.bf16.mxu0 0
      %2032 = vmatpush1.bf16.msra.mxu0 0
      %2033 = vmatprep.subr.bf16.mxu0 0
      %2034 = vmatpush1.bf16.msra.mxu0 0
      %2035 = vmatprep.subr.bf16.mxu0 0
      %2036 = vmatpush1.bf16.msra.mxu0 0
      %2037 = vmatprep.subr.bf16.mxu0 0
      %2038 = vmatpush1.bf16.msra.mxu0 0
      %2039 = vmatprep.subr.bf16.mxu0 0
      %2040 = vmatpush1.bf16.msra.mxu0 0
      %2041 = vmatprep.subr.bf16.mxu0 0
      %2042 = vmatpush1.bf16.msra.mxu0 0
      %2043 = vmatprep.subr.bf16.mxu0 0
      %2044 = vmatpush1.bf16.msra.mxu0 0
      %2045 = vmatprep.mubr.bf16.mxu0 0
      %2046 = vmatmul.mubr.bf16.gmra.mrb[0].mxu0 %v1969
      %v2047 = vpop.f32.mrb[0].mxu0
      %v2048 = vadd.f32 0.0, %v2047
      %v2049 = vpop.f32.mrb[0].mxu0
      %v2050 = vpop.f32.mrb[0].mxu0
      %v2051 = vadd.f32 0.0, %v2050
      %v2052 = vpop.f32.mrb[0].mxu0
      %2053 = vmatprep.mubr.bf16.mxu0 0
      %2054 = vmatmul.mubr.bf16.gmra.mrb[0].mxu0 %v1972
      %v2055 = vpop.f32.mrb[0].mxu0
      %v2056 = vadd.f32 0.0, %v2055
      %v2057 = vpop.f32.mrb[0].mxu0
      %v2058 = vpop.f32.mrb[0].mxu0
      %v2059 = vadd.f32 0.0, %v2058
      %v2060 = vpop.f32.mrb[0].mxu0
      %2061 = vmatprep.mubr.bf16.mxu0 0
      %2062 = vmatmul.mubr.bf16.gmra.mrb[0].mxu0 %v1975
      %v2063 = vpop.f32.mrb[0].mxu0
      %v2064 = vadd.f32 0.0, %v2063
      %v2065 = vpop.f32.mrb[0].mxu0
      %v2066 = vpop.f32.mrb[0].mxu0
      %v2067 = vadd.f32 0.0, %v2066
      %v2068 = vpop.f32.mrb[0].mxu0
      %2069 = vmatprep.mubr.bf16.mxu0 0
      %2070 = vmatmul.mubr.bf16.gmra.mrb[0].mxu0 %v1978
      %v2071 = vpop.f32.mrb[0].mxu0
      %v2072 = vadd.f32 0.0, %v2071
      %v2073 = vpop.f32.mrb[0].mxu0
      %v2074 = vpop.f32.mrb[0].mxu0
      %v2075 = vadd.f32 0.0, %v2074
      %v2076 = vpop.f32.mrb[0].mxu0
      %2077 = vmatprep.mubr.bf16.mxu0 0
      %2078 = vmatmul.mubr.bf16.gmra.mrb[0].mxu0 %v1981
      %v2079 = vpop.f32.mrb[0].mxu0
      %v2080 = vadd.f32 0.0, %v2079
      %v2081 = vpop.f32.mrb[0].mxu0
      %v2082 = vpop.f32.mrb[0].mxu0
      %v2083 = vadd.f32 0.0, %v2082
      %v2084 = vpop.f32.mrb[0].mxu0
      %2085 = vmatprep.mubr.bf16.mxu0 0
      %2086 = vmatmul.mubr.bf16.gmra.mrb[0].mxu0 %v1984
      %v2087 = vpop.f32.mrb[0].mxu0
      %v2088 = vadd.f32 0.0, %v2087
      %v2089 = vpop.f32.mrb[0].mxu0
      %v2090 = vpop.f32.mrb[0].mxu0
      %v2091 = vadd.f32 0.0, %v2090
      %v2092 = vpop.f32.mrb[0].mxu0
      %2093 = vmatprep.mubr.bf16.mxu0 0
      %2094 = vmatmul.mubr.bf16.gmra.mrb[0].mxu0 %v1987
      %v2095 = vpop.f32.mrb[0].mxu0
      %v2096 = vadd.f32 0.0, %v2095
      %v2097 = vpop.f32.mrb[0].mxu0
      %v2098 = vpop.f32.mrb[0].mxu0
      %v2099 = vadd.f32 0.0, %v2098
      %v2100 = vpop.f32.mrb[0].mxu0
      %2101 = vmatprep.mubr.bf16.mxu0 0
      %2102 = vmatmul.mubr.bf16.gmra.mrb[0].mxu0 %v1990
      %v2103 = vpop.f32.mrb[0].mxu0
      %v2104 = vadd.f32 0.0, %v2103
      %v2105 = vpop.f32.mrb[0].mxu0
      %v2106 = vpop.f32.mrb[0].mxu0
      %v2107 = vadd.f32 0.0, %v2106
      %v2108 = vpop.f32.mrb[0].mxu0
      %2109 = vmatprep.mubr.bf16.mxu0 0
      %2110 = vmatmul.mubr.bf16.gmra.mrb[0].mxu0 %v1993
      %v2111 = vpop.f32.mrb[0].mxu0
      %v2112 = vadd.f32 0.0, %v2111
      %v2113 = vpop.f32.mrb[0].mxu0
      %v2114 = vpop.f32.mrb[0].mxu0
      %v2115 = vadd.f32 0.0, %v2114
      %v2116 = vpop.f32.mrb[0].mxu0
      %2117 = vmatprep.mubr.bf16.mxu0 0
      %2118 = vmatmul.mubr.bf16.gmra.mrb[0].mxu0 %v1996
      %v2119 = vpop.f32.mrb[0].mxu0
      %v2120 = vadd.f32 0.0, %v2119
      %v2121 = vpop.f32.mrb[0].mxu0
      %v2122 = vpop.f32.mrb[0].mxu0
      %v2123 = vadd.f32 0.0, %v2122
      %v2124 = vpop.f32.mrb[0].mxu0
      %2125 = vmatprep.mubr.bf16.mxu0 0
      %2126 = vmatmul.mubr.bf16.gmra.mrb[0].mxu0 %v1999
      %v2127 = vpop.f32.mrb[0].mxu0
      %v2128 = vadd.f32 0.0, %v2127
      %v2129 = vpop.f32.mrb[0].mxu0
      %v2130 = vpop.f32.mrb[0].mxu0
      %v2131 = vadd.f32 0.0, %v2130
      %v2132 = vpop.f32.mrb[0].mxu0
      %2133 = vmatprep.mubr.bf16.mxu0 0
      %2134 = vmatmul.mubr.bf16.gmra.mrb[0].mxu0 %v2002
      %v2135 = vpop.f32.mrb[0].mxu0
      %v2136 = vadd.f32 0.0, %v2135
      %v2137 = vpop.f32.mrb[0].mxu0
      %v2138 = vpop.f32.mrb[0].mxu0
      %v2139 = vadd.f32 0.0, %v2138
      %v2140 = vpop.f32.mrb[0].mxu0
      %2141 = vmatprep.mubr.bf16.mxu0 0
      %2142 = vmatmul.mubr.bf16.gmra.mrb[0].mxu0 %v2005
      %v2143 = vpop.f32.mrb[0].mxu0
      %v2144 = vadd.f32 0.0, %v2143
      %v2145 = vpop.f32.mrb[0].mxu0
      %v2146 = vpop.f32.mrb[0].mxu0
      %v2147 = vadd.f32 0.0, %v2146
      %v2148 = vpop.f32.mrb[0].mxu0
      %2149 = vmatprep.mubr.bf16.mxu0 0
      %2150 = vmatmul.mubr.bf16.gmra.mrb[0].mxu0 %v2008
      %v2151 = vpop.f32.mrb[0].mxu0
      %v2152 = vadd.f32 0.0, %v2151
      %v2153 = vpop.f32.mrb[0].mxu0
      %v2154 = vpop.f32.mrb[0].mxu0
      %v2155 = vadd.f32 0.0, %v2154
      %v2156 = vpop.f32.mrb[0].mxu0
      %2157 = vdwg.mxu0
      %v2158 = vadd.f32 %v1896, %v2048
      %v2159 = vadd.f32 %v1897, %v2051
      %v2160 = vadd.f32 %v1898, %v2056
      %v2161 = vadd.f32 %v1899, %v2059
      %v2162 = vadd.f32 %v1900, %v2064
      %v2163 = vadd.f32 %v1901, %v2067
      %v2164 = vadd.f32 %v1902, %v2072
      %v2165 = vadd.f32 %v1903, %v2075
      %v2166 = vadd.f32 %v1904, %v2080
      %v2167 = vadd.f32 %v1905, %v2083
      %v2168 = vadd.f32 %v1906, %v2088
      %v2169 = vadd.f32 %v1907, %v2091
      %v2170 = vadd.f32 %v1908, %v2096
      %v2171 = vadd.f32 %v1909, %v2099
      %v2172 = vadd.f32 %v1910, %v2104
      %v2173 = vadd.f32 %v1911, %v2107
      %v2174 = vadd.f32 %v1912, %v2112
      %v2175 = vadd.f32 %v1913, %v2115
      %v2176 = vadd.f32 %v1914, %v2120
      %v2177 = vadd.f32 %v1915, %v2123
      %v2178 = vadd.f32 %v1916, %v2128
      %v2179 = vadd.f32 %v1917, %v2131
      %v2180 = vadd.f32 %v1918, %v2136
      %v2181 = vadd.f32 %v1919, %v2139
      %v2182 = vadd.f32 %v1920, %v2144
      %v2183 = vadd.f32 %v1921, %v2147
      %v2184 = vadd.f32 %v1922, %v2152
      %v2185 = vadd.f32 %v1923, %v2155
      %v2186 = vld [vmem:[%s138 + $0x22] sm:$0xff]
      %v2187 = vld [vmem:[%s138 + $0x2a] sm:$0xff]
      %v2188 = vld [vmem:[%s138 + $0x32] sm:$0xff]
      %v2189 = vld [vmem:[%s138 + $0x3a] sm:$0xff]
      %v2190 = vld [vmem:[%s138 + $0x42] sm:$0xff]
      %v2191 = vld [vmem:[%s138 + $0x4a] sm:$0xff]
      %v2192 = vld [vmem:[%s138 + $0x52] sm:$0xff]
      %v2193 = vld [vmem:[%s138 + $0x5a] sm:$0xff]
      %v2194 = vld [vmem:[%s138 + $0x62] sm:$0xff]
      %v2195 = vld [vmem:[%s138 + $0x6a] sm:$0xff]
      %v2196 = vld [vmem:[%s138 + $0x72] sm:$0xff]
      %v2197 = vld [vmem:[%s138 + $0x7a] sm:$0xff]
      %v2198 = vld [vmem:[%s138 + $0x82] sm:$0xff]
      %v2199 = vld [vmem:[%s138 + $0x8a] sm:$0xff]
      %v2200 = vld [vmem:[%s138 + $0x92] sm:$0xff]
      %v2201 = vld [vmem:[%s138 + $0x9a] sm:$0xff]
      %v2202 = vld [vmem:[%s138 + $0xa2] sm:$0xff]
      %v2203 = vld [vmem:[%s138 + $0xaa] sm:$0xff]
      %v2204 = vld [vmem:[%s138 + $0xb2] sm:$0xff]
      %v2205 = vld [vmem:[%s138 + $0xba] sm:$0xff]
      %v2206 = vld [vmem:[%s138 + $0xc2] sm:$0xff]
      %v2207 = vld [vmem:[%s138 + $0xca] sm:$0xff]
      %v2208 = vld [vmem:[%s138 + $0xd2] sm:$0xff]
      %v2209 = vld [vmem:[%s138 + $0xda] sm:$0xff]
      %v2210 = vld [vmem:[%s138 + $0xe2] sm:$0xff]
      %v2211 = vld [vmem:[%s138 + $0xea] sm:$0xff]
      %v2212 = vld [vmem:[%s138 + $0xf2] sm:$0xff]
      %v2213 = vld [vmem:[%s138 + $0xfa] sm:$0xff]
      %v2214 = vpack.c.bf16 %v2187, %v2186
      %v2215 = vpack.c.bf16 %v2189, %v2188
      %v2216 = vpack.c.bf16 %v2191, %v2190
      %v2217 = vpack.c.bf16 %v2193, %v2192
      %v2218 = vpack.c.bf16 %v2195, %v2194
      %v2219 = vpack.c.bf16 %v2197, %v2196
      %v2220 = vpack.c.bf16 %v2199, %v2198
      %v2221 = vpack.c.bf16 %v2201, %v2200
      %v2222 = vpack.c.bf16 %v2203, %v2202
      %v2223 = vpack.c.bf16 %v2205, %v2204
      %v2224 = vpack.c.bf16 %v2207, %v2206
      %v2225 = vpack.c.bf16 %v2209, %v2208
      %v2226 = vpack.c.bf16 %v2211, %v2210
      %v2227 = vpack.c.bf16 %v2213, %v2212
      %s2228 = scalar_lea.vmem %s1, 32
      %v2229 = vld [vmem:[%s2228] sm:$0xf]
      %v2231 = vsel %vm232, %v2214, 0
      %v2234 = vsel %vm232, %v2215, 0
      %v2237 = vsel %vm232, %v2216, 0
      %v2240 = vsel %vm232, %v2217, 0
      %v2243 = vsel %vm232, %v2218, 0
      %v2246 = vsel %vm232, %v2219, 0
      %v2249 = vsel %vm232, %v2220, 0
      %v2252 = vsel %vm232, %v2221, 0
      %v2255 = vsel %vm232, %v2222, 0
      %v2258 = vsel %vm232, %v2223, 0
      %v2261 = vsel %vm232, %v2224, 0
      %v2264 = vsel %vm232, %v2225, 0
      %v2267 = vsel %vm232, %v2226, 0
      %v2270 = vsel %vm232, %v2227, 0
      %v2273 = vsel %vm275, %v2229, 0
      %2275 = vmatprep.subr.bf16.mxu0 0
      %2276 = vmatpush1.bf16.msra.mxu0 %v2273
      %2277 = vmatprep.subr.bf16.mxu0 0
      %2278 = vmatpush1.bf16.msra.mxu0 0
      %2279 = vmatprep.subr.bf16.mxu0 0
      %2280 = vmatpush1.bf16.msra.mxu0 0
      %2281 = vmatprep.subr.bf16.mxu0 0
      %2282 = vmatpush1.bf16.msra.mxu0 0
      %2283 = vmatprep.subr.bf16.mxu0 0
      %2284 = vmatpush1.bf16.msra.mxu0 0
      %2285 = vmatprep.subr.bf16.mxu0 0
      %2286 = vmatpush1.bf16.msra.mxu0 0
      %2287 = vmatprep.subr.bf16.mxu0 0
      %2288 = vmatpush1.bf16.msra.mxu0 0
      %2289 = vmatprep.subr.bf16.mxu0 0
      %2290 = vmatpush1.bf16.msra.mxu0 0
      %2291 = vmatprep.subr.bf16.mxu0 0
      %2292 = vmatpush1.bf16.msra.mxu0 0
      %2293 = vmatprep.subr.bf16.mxu0 0
      %2294 = vmatpush1.bf16.msra.mxu0 0
      %2295 = vmatprep.subr.bf16.mxu0 0
      %2296 = vmatpush1.bf16.msra.mxu0 0
      %2297 = vmatprep.subr.bf16.mxu0 0
      %2298 = vmatpush1.bf16.msra.mxu0 0
      %2299 = vmatprep.subr.bf16.mxu0 0
      %2300 = vmatpush1.bf16.msra.mxu0 0
      %2301 = vmatprep.subr.bf16.mxu0 0
      %2302 = vmatpush1.bf16.msra.mxu0 0
      %2303 = vmatprep.subr.bf16.mxu0 0
      %2304 = vmatpush1.bf16.msra.mxu0 0
      %2305 = vmatprep.subr.bf16.mxu0 0
      %2306 = vmatpush1.bf16.msra.mxu0 0
      %2307 = vmatprep.mubr.bf16.mxu0 0
      %2308 = vmatmul.mubr.bf16.gmra.mrb[0].mxu0 %v2231
      %v2309 = vpop.f32.mrb[0].mxu0
      %v2310 = vadd.f32 0.0, %v2309
      %v2311 = vpop.f32.mrb[0].mxu0
      %v2312 = vpop.f32.mrb[0].mxu0
      %v2313 = vadd.f32 0.0, %v2312
      %v2314 = vpop.f32.mrb[0].mxu0
      %2315 = vmatprep.mubr.bf16.mxu0 0
      %2316 = vmatmul.mubr.bf16.gmra.mrb[0].mxu0 %v2234
      %v2317 = vpop.f32.mrb[0].mxu0
      %v2318 = vadd.f32 0.0, %v2317
      %v2319 = vpop.f32.mrb[0].mxu0
      %v2320 = vpop.f32.mrb[0].mxu0
      %v2321 = vadd.f32 0.0, %v2320
      %v2322 = vpop.f32.mrb[0].mxu0
      %2323 = vmatprep.mubr.bf16.mxu0 0
      %2324 = vmatmul.mubr.bf16.gmra.mrb[0].mxu0 %v2237
      %v2325 = vpop.f32.mrb[0].mxu0
      %v2326 = vadd.f32 0.0, %v2325
      %v2327 = vpop.f32.mrb[0].mxu0
      %v2328 = vpop.f32.mrb[0].mxu0
      %v2329 = vadd.f32 0.0, %v2328
      %v2330 = vpop.f32.mrb[0].mxu0
      %2331 = vmatprep.mubr.bf16.mxu0 0
      %2332 = vmatmul.mubr.bf16.gmra.mrb[0].mxu0 %v2240
      %v2333 = vpop.f32.mrb[0].mxu0
      %v2334 = vadd.f32 0.0, %v2333
      %v2335 = vpop.f32.mrb[0].mxu0
      %v2336 = vpop.f32.mrb[0].mxu0
      %v2337 = vadd.f32 0.0, %v2336
      %v2338 = vpop.f32.mrb[0].mxu0
      %2339 = vmatprep.mubr.bf16.mxu0 0
      %2340 = vmatmul.mubr.bf16.gmra.mrb[0].mxu0 %v2243
      %v2341 = vpop.f32.mrb[0].mxu0
      %v2342 = vadd.f32 0.0, %v2341
      %v2343 = vpop.f32.mrb[0].mxu0
      %v2344 = vpop.f32.mrb[0].mxu0
      %v2345 = vadd.f32 0.0, %v2344
      %v2346 = vpop.f32.mrb[0].mxu0
      %2347 = vmatprep.mubr.bf16.mxu0 0
      %2348 = vmatmul.mubr.bf16.gmra.mrb[0].mxu0 %v2246
      %v2349 = vpop.f32.mrb[0].mxu0
      %v2350 = vadd.f32 0.0, %v2349
      %v2351 = vpop.f32.mrb[0].mxu0
      %v2352 = vpop.f32.mrb[0].mxu0
      %v2353 = vadd.f32 0.0, %v2352
      %v2354 = vpop.f32.mrb[0].mxu0
      %2355 = vmatprep.mubr.bf16.mxu0 0
      %2356 = vmatmul.mubr.bf16.gmra.mrb[0].mxu0 %v2249
      %v2357 = vpop.f32.mrb[0].mxu0
      %v2358 = vadd.f32 0.0, %v2357
      %v2359 = vpop.f32.mrb[0].mxu0
      %v2360 = vpop.f32.mrb[0].mxu0
      %v2361 = vadd.f32 0.0, %v2360
      %v2362 = vpop.f32.mrb[0].mxu0
      %2363 = vmatprep.mubr.bf16.mxu0 0
      %2364 = vmatmul.mubr.bf16.gmra.mrb[0].mxu0 %v2252
      %v2365 = vpop.f32.mrb[0].mxu0
      %v2366 = vadd.f32 0.0, %v2365
      %v2367 = vpop.f32.mrb[0].mxu0
      %v2368 = vpop.f32.mrb[0].mxu0
      %v2369 = vadd.f32 0.0, %v2368
      %v2370 = vpop.f32.mrb[0].mxu0
      %2371 = vmatprep.mubr.bf16.mxu0 0
      %2372 = vmatmul.mubr.bf16.gmra.mrb[0].mxu0 %v2255
      %v2373 = vpop.f32.mrb[0].mxu0
      %v2374 = vadd.f32 0.0, %v2373
      %v2375 = vpop.f32.mrb[0].mxu0
      %v2376 = vpop.f32.mrb[0].mxu0
      %v2377 = vadd.f32 0.0, %v2376
      %v2378 = vpop.f32.mrb[0].mxu0
      %2379 = vmatprep.mubr.bf16.mxu0 0
      %2380 = vmatmul.mubr.bf16.gmra.mrb[0].mxu0 %v2258
      %v2381 = vpop.f32.mrb[0].mxu0
      %v2382 = vadd.f32 0.0, %v2381
      %v2383 = vpop.f32.mrb[0].mxu0
      %v2384 = vpop.f32.mrb[0].mxu0
      %v2385 = vadd.f32 0.0, %v2384
      %v2386 = vpop.f32.mrb[0].mxu0
      %2387 = vmatprep.mubr.bf16.mxu0 0
      %2388 = vmatmul.mubr.bf16.gmra.mrb[0].mxu0 %v2261
      %v2389 = vpop.f32.mrb[0].mxu0
      %v2390 = vadd.f32 0.0, %v2389
      %v2391 = vpop.f32.mrb[0].mxu0
      %v2392 = vpop.f32.mrb[0].mxu0
      %v2393 = vadd.f32 0.0, %v2392
      %v2394 = vpop.f32.mrb[0].mxu0
      %2395 = vmatprep.mubr.bf16.mxu0 0
      %2396 = vmatmul.mubr.bf16.gmra.mrb[0].mxu0 %v2264
      %v2397 = vpop.f32.mrb[0].mxu0
      %v2398 = vadd.f32 0.0, %v2397
      %v2399 = vpop.f32.mrb[0].mxu0
      %v2400 = vpop.f32.mrb[0].mxu0
      %v2401 = vadd.f32 0.0, %v2400
      %v2402 = vpop.f32.mrb[0].mxu0
      %2403 = vmatprep.mubr.bf16.mxu0 0
      %2404 = vmatmul.mubr.bf16.gmra.mrb[0].mxu0 %v2267
      %v2405 = vpop.f32.mrb[0].mxu0
      %v2406 = vadd.f32 0.0, %v2405
      %v2407 = vpop.f32.mrb[0].mxu0
      %v2408 = vpop.f32.mrb[0].mxu0
      %v2409 = vadd.f32 0.0, %v2408
      %v2410 = vpop.f32.mrb[0].mxu0
      %2411 = vmatprep.mubr.bf16.mxu0 0
      %2412 = vmatmul.mubr.bf16.gmra.mrb[0].mxu0 %v2270
      %v2413 = vpop.f32.mrb[0].mxu0
      %v2414 = vadd.f32 0.0, %v2413
      %v2415 = vpop.f32.mrb[0].mxu0
      %v2416 = vpop.f32.mrb[0].mxu0
      %v2417 = vadd.f32 0.0, %v2416
      %v2418 = vpop.f32.mrb[0].mxu0
      %2419 = vdwg.mxu0
      %v2420 = vadd.f32 %v2158, %v2310
      %v2421 = vadd.f32 %v2159, %v2313
      %v2422 = vadd.f32 %v2160, %v2318
      %v2423 = vadd.f32 %v2161, %v2321
      %v2424 = vadd.f32 %v2162, %v2326
      %v2425 = vadd.f32 %v2163, %v2329
      %v2426 = vadd.f32 %v2164, %v2334
      %v2427 = vadd.f32 %v2165, %v2337
      %v2428 = vadd.f32 %v2166, %v2342
      %v2429 = vadd.f32 %v2167, %v2345
      %v2430 = vadd.f32 %v2168, %v2350
      %v2431 = vadd.f32 %v2169, %v2353
      %v2432 = vadd.f32 %v2170, %v2358
      %v2433 = vadd.f32 %v2171, %v2361
      %v2434 = vadd.f32 %v2172, %v2366
      %v2435 = vadd.f32 %v2173, %v2369
      %v2436 = vadd.f32 %v2174, %v2374
      %v2437 = vadd.f32 %v2175, %v2377
      %v2438 = vadd.f32 %v2176, %v2382
      %v2439 = vadd.f32 %v2177, %v2385
      %v2440 = vadd.f32 %v2178, %v2390
      %v2441 = vadd.f32 %v2179, %v2393
      %v2442 = vadd.f32 %v2180, %v2398
      %v2443 = vadd.f32 %v2181, %v2401
      %v2444 = vadd.f32 %v2182, %v2406
      %v2445 = vadd.f32 %v2183, %v2409
      %v2446 = vadd.f32 %v2184, %v2414
      %v2447 = vadd.f32 %v2185, %v2417
      %2448 = vst [vmem:[%s143] sm:$0xff] %v2420
      %2449 = vst [vmem:[%s143 + $0x8] sm:$0xff] %v2421
      %2450 = vst [vmem:[%s143 + $0x10] sm:$0xff] %v2422
      %2451 = vst [vmem:[%s143 + $0x18] sm:$0xff] %v2423
      %2452 = vst [vmem:[%s143 + $0x20] sm:$0xff] %v2424
      %2453 = vst [vmem:[%s143 + $0x28] sm:$0xff] %v2425
      %2454 = vst [vmem:[%s143 + $0x30] sm:$0xff] %v2426
      %2455 = vst [vmem:[%s143 + $0x38] sm:$0xff] %v2427
      %2456 = vst [vmem:[%s143 + $0x40] sm:$0xff] %v2428
      %2457 = vst [vmem:[%s143 + $0x48] sm:$0xff] %v2429
      %2458 = vst [vmem:[%s143 + $0x50] sm:$0xff] %v2430
      %2459 = vst [vmem:[%s143 + $0x58] sm:$0xff] %v2431
      %2460 = vst [vmem:[%s143 + $0x60] sm:$0xff] %v2432
      %2461 = vst [vmem:[%s143 + $0x68] sm:$0xff] %v2433
      %2462 = vst [vmem:[%s143 + $0x70] sm:$0xff] %v2434
      %2463 = vst [vmem:[%s143 + $0x78] sm:$0xff] %v2435
      %2464 = vst [vmem:[%s143 + $0x80] sm:$0xff] %v2436
      %2465 = vst [vmem:[%s143 + $0x88] sm:$0xff] %v2437
      %2466 = vst [vmem:[%s143 + $0x90] sm:$0xff] %v2438
      %2467 = vst [vmem:[%s143 + $0x98] sm:$0xff] %v2439
      %2468 = vst [vmem:[%s143 + $0xa0] sm:$0xff] %v2440
      %2469 = vst [vmem:[%s143 + $0xa8] sm:$0xff] %v2441
      %2470 = vst [vmem:[%s143 + $0xb0] sm:$0xff] %v2442
      %2471 = vst [vmem:[%s143 + $0xb8] sm:$0xff] %v2443
      %2472 = vst [vmem:[%s143 + $0xc0] sm:$0xff] %v2444
      %2473 = vst [vmem:[%s143 + $0xc8] sm:$0xff] %v2445
      %2474 = vst [vmem:[%s143 + $0xd0] sm:$0xff] %v2446
      %2475 = vst [vmem:[%s143 + $0xd8] sm:$0xff] %v2447
      %p2476 = scmp.lt.s32.totalorder %s13, 1
      %s2477 = scalar_select %p2476, %s13, 1
      %s2478 = smul.addr %s2477, 28
      %s2479 = smul.addr %s2478, 8
      %s2480 = scalar_lea.vmem %s2, %s2479
      // Predicated region
      $region29: #{conv_preprocess_forward.1} parent=27 // pred_check
        %p2481 = pneg %p78
      $region30: #{conv_preprocess_forward.1} parent=27 // pred_check_branch
        %2483 = sbr.rel (%p2481) target = $region32
      $region31: #{conv_preprocess_forward.1} parent=27 // pred_region
        _
      $region32: #{conv_preprocess_forward.1} parent=27 // pred_fallthru
        _
    $region28: #{conv_preprocess_forward.1} parent=5 // pred_fallthru
      _
    %p2484 = scmp.le.s32.totalorder 2, %s8
    // Predicated region
    $region33: #{conv_preprocess_forward.1} parent=5 // pred_check
      %p2485 = pneg %p2484
    $region34: #{conv_preprocess_forward.1} parent=5 // pred_check_branch
      %2487 = sbr.rel (%p2485) target = $region36
    $region35: #{conv_preprocess_forward.1} parent=5 // pred_region
      %s2488 = ssub.s32 %s8, 2
      // Predicated region
      $region37: #{conv_preprocess_forward.1} parent=35 // pred_check
        %p2489 = pneg %p84
      $region38: #{conv_preprocess_forward.1} parent=35 // pred_check_branch
        %2491 = sbr.rel (%p2489) target = $region40
      $region39: #{conv_preprocess_forward.1} parent=35 // pred_region
        %p2492 = scmp.lt.s32.totalorder %s14, 1
        %s2493 = scalar_select %p2492, %s14, 1
        %s2494 = smul.addr %s2493, 28
        %s2495 = smul.addr %s2494, 8
        %s2496 = scalar_lea.vmem %s2, %s2495
      $region40: #{conv_preprocess_forward.1} parent=35 // pred_fallthru
        _
    $region36: #{conv_preprocess_forward.1} parent=5 // pred_fallthru
      _
  $region6: #{conv_preprocess_forward.1} parent=0 // loop_footer
    %s12 = sadd.s32 1, %s8
  $region7: #{conv_preprocess_forward.1} parent=0 // loop_footer_branch
    %7 = sbr.rel target = $region3
  $region8: #{conv_preprocess_forward.1} parent=0 // loop_exit
    _

</llo_original>
